<compile_context>
chip_gen: v7x
topology: tpu7x:2x2x1
jax: 0.10.0
libtpu: 0.0.40
codegen_flags: <defaults>
</compile_context>

<pallas_src>
from collections import OrderedDict

import numpy as np
import jax
import jax.numpy as jnp
from jax import lax
from jax.experimental import pallas as pl
from jax.experimental.pallas import tpu as pltpu

# ---------------------------------------------------------------------------
# Synthetic config (stands in for `cfg` / `ob_space` of the PyTorch Decoder)
# ---------------------------------------------------------------------------
STATE_DIM    = 32                 # feat (latent state) dim
IMAGE_SHAPE  = (16, 16, 3)        # cfg.image_shape  (H, W, C) -> 3-dim obs "image"
KERNEL_SIZE  = (5, 8)             # cfg.kernel_size
STRIDE       = (1, 2)             # cfg.stride   (1x1 -> 5x5 -> 16x16)
CONV_DIM     = (32, 16)           # cfg.conv_dim (conv_dim[0] feeds the fc)
HIDDEN_DIMS  = (32, 32)           # cfg.hidden_dims for the DenseDecoder
STATE_OB_DIM = 8                  # flat dim of the 1-dim obs "state"
BATCH        = 2
# cfg.cnn_act = cfg.dense_act = ReLU

K_MID = CONV_DIM[1] * KERNEL_SIZE[0] * KERNEL_SIZE[0]       # 16*5*5 = 400
IMG_N = IMAGE_SHAPE[0] * IMAGE_SHAPE[1] * IMAGE_SHAPE[2]    # 768 = 6*128
BATCH_TILE = 8                    # f32 sublane-dense batch tile


# ---------------------------------------------------------------------------
# Single fused Pallas kernel: entire decoder forward (one batch tile per step)
# ---------------------------------------------------------------------------
def _decoder_kernel(feat_ref,
                    w1_ref, b1_ref, w2_ref, b2_ref,          # conv path (bf16 W, f32 b)
                    wh0_ref, bh0_ref, wh1_ref, bh1_ref,      # dense hidden layers
                    wh_ref, bh_ref,                          # merged dense head
                    img_ref, head_ref):
    feat = feat_ref[...]                                     # (TB, 32) f32

    # --- ConvDecoder path: (fc ∘ deconv1) fused, ReLU, deconv2 -------------
    # bf16 operands on the MXU, f32 accumulation; activations kept f32.
    h = jnp.dot(feat.astype(jnp.bfloat16), w1_ref[...],
                preferred_element_type=jnp.float32) + b1_ref[...]
    h = jnp.maximum(h, 0.0)                                  # cnn_act = ReLU
    img_ref[...] = jnp.dot(h.astype(jnp.bfloat16), w2_ref[...],
                           preferred_element_type=jnp.float32) + b2_ref[...]

    # --- DenseDecoder path (tiny f32 matmuls, all in VMEM) ------------------
    g = jnp.maximum(jnp.dot(feat, wh0_ref[...],
                            preferred_element_type=jnp.float32) + bh0_ref[...], 0.0)
    g = jnp.maximum(jnp.dot(g, wh1_ref[...],
                            preferred_element_type=jnp.float32) + bh1_ref[...], 0.0)
    y = jnp.dot(g, wh_ref[...],
                preferred_element_type=jnp.float32) + bh_ref[...]   # (TB, 16)
    # lanes [0,8): mean (identity); lanes [8,16): std = (tanh+1)*0.7+0.1
    lane = lax.broadcasted_iota(jnp.int32, y.shape, 1)
    y_std = (jnp.tanh(y) + 1.0) * 0.7 + 0.1
    head_ref[...] = jnp.where(lane < STATE_OB_DIM, y, y_std)


def decoder_forward(params, feat):
    """Fused decoder forward. Returns OrderedDict of per-obs Normal params."""
    B = feat.shape[0]
    TB = BATCH_TILE
    B_pad = ((B + TB - 1) // TB) * TB
    if B_pad != B:
        feat_p = jnp.zeros((B_pad, STATE_DIM), feat.dtype).at[:B].set(feat)
    else:
        feat_p = feat
    n_tiles = B_pad // TB

    weight_names = ("w1", "b1", "w2", "b2",
                    "wh0", "bh0", "wh1", "bh1", "wh", "bh")
    weights = [params[k] for k in weight_names]

    def const_spec(a):
        # Grid-invariant block: weights DMA'd once, stay VMEM-resident.
        return pl.BlockSpec(a.shape, lambda i: (0,) * a.ndim)

    in_specs = ([pl.BlockSpec((TB, STATE_DIM), lambda i: (i, 0))]
                + [const_spec(a) for a in weights])
    out_specs = (pl.BlockSpec((TB, IMG_N), lambda i: (i, 0)),
                 pl.BlockSpec((TB, 2 * STATE_OB_DIM), lambda i: (i, 0)))

    flops = 2 * B_pad * (STATE_DIM * K_MID + K_MID * IMG_N
                         + STATE_DIM * HIDDEN_DIMS[0]
                         + HIDDEN_DIMS[0] * HIDDEN_DIMS[1]
                         + HIDDEN_DIMS[1] * 2 * STATE_OB_DIM)
    bytes_accessed = (sum(int(np.prod(a.shape)) * a.dtype.itemsize for a in weights)
                      + B_pad * STATE_DIM * 4
                      + B_pad * (IMG_N + 2 * STATE_OB_DIM) * 4)

    img, head = pl.pallas_call(
        _decoder_kernel,
        grid=(n_tiles,),
        out_shape=(jax.ShapeDtypeStruct((B_pad, IMG_N), jnp.float32),
                   jax.ShapeDtypeStruct((B_pad, 2 * STATE_OB_DIM), jnp.float32)),
        in_specs=in_specs,
        out_specs=out_specs,
        compiler_params=pltpu.CompilerParams(
            dimension_semantics=("parallel",)),        # v7x: both TensorCores
        cost_estimate=pl.CostEstimate(
            flops=flops,
            transcendentals=B_pad * STATE_OB_DIM,
            bytes_accessed=bytes_accessed),
    )(feat_p, *weights)

    img_mean = img[:B].reshape(B, IMAGE_SHAPE[2], IMAGE_SHAPE[0], IMAGE_SHAPE[1])
    out = OrderedDict()
    # Normal(x, 1): std is a broadcastable 0-d array (not materialized per-pixel).
    out["image"] = {"mean": img_mean, "std": jnp.ones((), jnp.float32)}
    out["state"] = {"mean": head[:B, :STATE_OB_DIM], "std": head[:B, STATE_OB_DIM:]}
    # TODO(synk): Normal / MixedDistribution wrappers have no Pallas analogue;
    # we return the distribution parameters (mean, std) instead.
    return out


# ---------------------------------------------------------------------------
# Parameter setup: ConvTranspose2d -> dense matmul embedding (exact, no pad)
# ---------------------------------------------------------------------------
def deconv_as_dense(w, b, in_h, in_w, stride):
    """Embed ConvTranspose2d(w:(Cin,Cout,K,K), b) into (Cin*H*W, Cout*OH*OW)."""
    c_in, c_out, kh_sz, kw_sz = w.shape
    out_h = (in_h - 1) * stride + kh_sz
    out_w = (in_w - 1) * stride + kw_sz
    wb = np.zeros((c_in * in_h * in_w, c_out * out_h * out_w), np.float32)
    ci, ih, iw, co, kh, kw = np.meshgrid(
        np.arange(c_in), np.arange(in_h), np.arange(in_w),
        np.arange(c_out), np.arange(kh_sz), np.arange(kw_sz), indexing="ij")
    rows = (ci * in_h + ih) * in_w + iw
    cols = (co * out_h + ih * stride + kh) * out_w + (iw * stride + kw)
    wb[rows.ravel(), cols.ravel()] = w[ci, co, kh, kw].ravel()
    bb = np.repeat(b.astype(np.float32), out_h * out_w)
    return wb, bb, out_h, out_w
    # TODO(synk): the dense embedding of deconv2 is ~78% structural zeros; at
    # larger conv_dim / image sizes switch to the block-structured form.


def init_params(key):
    ks = jax.random.split(key, 12)

    def lin(k, fan_in, fan_out):
        k1, k2 = jax.random.split(k)
        s = 1.0 / np.sqrt(fan_in)
        return (jax.random.uniform(k1, (fan_in, fan_out), jnp.float32, -s, s),
                jax.random.uniform(k2, (fan_out,), jnp.float32, -s, s))

    raw = {}
    # ConvDecoder.fc : MLP(state_dim, conv_dim[0], [], None) == single Linear
    raw["fc_w"], raw["fc_b"] = lin(ks[0], STATE_DIM, CONV_DIM[0])
    # deconv1 : ConvTranspose2d(conv_dim[0], conv_dim[1], k=5, s=1)
    c0, c1, k0 = CONV_DIM[0], CONV_DIM[1], KERNEL_SIZE[0]
    s0 = 1.0 / np.sqrt(c0 * k0 * k0)
    raw["dw1"] = jax.random.uniform(ks[1], (c0, c1, k0, k0), jnp.float32, -s0, s0)
    raw["db1"] = jax.random.uniform(ks[2], (c1,), jnp.float32, -s0, s0)
    # deconv2 : ConvTranspose2d(conv_dim[1], shape[-1]=3, k=8, s=2)
    c2, k1 = IMAGE_SHAPE[2], KERNEL_SIZE[1]
    s1 = 1.0 / np.sqrt(c1 * k1 * k1)
    raw["dw2"] = jax.random.uniform(ks[3], (c1, c2, k1, k1), jnp.float32, -s1, s1)
    raw["db2"] = jax.random.uniform(ks[4], (c2,), jnp.float32, -s1, s1)
    # DenseDecoder.fc : MLP(state_dim, 2*ob_dim, HIDDEN_DIMS, relu)
    d_prev = STATE_DIM
    for i, h in enumerate(HIDDEN_DIMS):
        raw[f"w{i}"], raw[f"b{i}"] = lin(ks[5 + i], d_prev, h)
        d_prev = h
    raw["w_out"], raw["b_out"] = lin(ks[5 + len(HIDDEN_DIMS)], d_prev, 2 * STATE_OB_DIM)

    raw_np = {k: np.asarray(v) for k, v in raw.items()}

    # ConvTranspose2d -> dense matmul embedding (exact)
    wb1, bb1, h1, sw1 = deconv_as_dense(raw_np["dw1"], raw_np["db1"], 1, 1, STRIDE[0])
    wb2, bb2, h2, sw2 = deconv_as_dense(raw_np["dw2"], raw_np["db2"], h1, sw1, STRIDE[1])
    assert (h2, sw2) == (IMAGE_SHAPE[0], IMAGE_SHAPE[1])
    assert wb1.shape[1] == K_MID and wb2.shape == (K_MID, IMG_N)

    # Fold fc into deconv1 (both linear, no activation between them — the
    # spec's MLP(state_dim, conv_dim[0], [], None) has no hidden layers and
    # no activation, so the fold is exact).
    comp_w = raw_np["fc_w"] @ wb1                      # (STATE_DIM, 400)
    comp_b = raw_np["fc_b"] @ wb1 + bb1                # (400,)

    params = {
        # deconv weights stored bf16 (halves the dominant weight DMA); biases f32.
        # No zero-row padding of w2: K=400 is used directly in the kernel.
        "w1": jnp.asarray(comp_w, jnp.bfloat16),
        "b1": jnp.asarray(comp_b.reshape(1, -1), jnp.float32),
        "w2": jnp.asarray(wb2, jnp.bfloat16),
        "b2": jnp.asarray(bb2.reshape(1, -1), jnp.float32),
        # DenseDecoder hidden layers (tiny; keep f32).
        "wh0": raw["w0"], "bh0": raw["b0"].reshape(1, -1),
        "wh1": raw["w1"], "bh1": raw["b1"].reshape(1, -1),
        # Merged output head: single (32, 16) matmul, mean/std split in wrapper.
        "wh": raw["w_out"], "bh": raw["b_out"].reshape(1, -1),
    }
    return params, raw_np


# ---------------------------------------------------------------------------
# Pure-numpy reference (mirrors the PyTorch forward exactly)
# ---------------------------------------------------------------------------
def _np_conv_transpose(x, w, b, stride):
    Bn, ci, ih, iw = x.shape
    _, co, kh, kw = w.shape
    oh, ow = (ih - 1) * stride + kh, (iw - 1) * stride + kw
    out = np.tile(b.reshape(1, co, 1, 1), (Bn, 1, oh, ow)).astype(np.float32)
    for i in range(ih):
        for j in range(iw):
            contrib = np.einsum("bc,cokl->bokl", x[:, :, i, j], w)
            out[:, :, i * stride:i * stride + kh, j * stride:j * stride + kw] += contrib
    return out


def reference_forward(raw, feat):
    relu = lambda a: np.maximum(a, 0.0)
    h = feat @ raw["fc_w"] + raw["fc_b"]
    x = h.reshape(-1, CONV_DIM[0], 1, 1)
    x = relu(_np_conv_transpose(x, raw["dw1"], raw["db1"], STRIDE[0]))
    x = _np_conv_transpose(x, raw["dw2"], raw["db2"], STRIDE[1])
    g = feat
    for i in range(len(HIDDEN_DIMS)):
        g = relu(g @ raw[f"w{i}"] + raw[f"b{i}"])
    y = g @ raw["w_out"] + raw["b_out"]
    mean, srw = y[:, :STATE_OB_DIM], y[:, STATE_OB_DIM:]
    std = (np.tanh(srw) + 1.0) * 0.7 + 0.1
    return {"image_mean": x, "state_mean": mean, "state_std": std}


# ---------------------------------------------------------------------------
if __name__ == "__main__":
    key = jax.random.PRNGKey(0)
    kfeat, kparam = jax.random.split(key)
    feat = jax.random.normal(kfeat, (BATCH, STATE_DIM), jnp.float32)

    params, raw_np = init_params(kparam)

    fwd = jax.jit(decoder_forward)
    dists = fwd(params, feat)
    jax.block_until_ready(dists)

    # sanity check against the numpy reference
    ref = reference_forward(raw_np, np.asarray(feat))
    np.testing.assert_allclose(
        np.asarray(dists["image"]["mean"]).reshape(ref["image_mean"].shape),
        ref["image_mean"], rtol=5e-2, atol=5e-2)          # bf16 conv weights
    np.testing.assert_allclose(np.asarray(dists["state"]["mean"]), ref["state_mean"],
                               rtol=1e-2, atol=1e-2)      # f32 dense path
    np.testing.assert_allclose(np.asarray(dists["state"]["std"]), ref["state_std"],
                               rtol=1e-2, atol=1e-2)
    assert dists["image"]["mean"].shape == (BATCH, IMAGE_SHAPE[2],
                                            IMAGE_SHAPE[0], IMAGE_SHAPE[1])
    assert float(dists["image"]["std"]) == 1.0
    assert dists["state"]["mean"].shape == (BATCH, STATE_OB_DIM)
    assert dists["state"]["std"].shape == (BATCH, STATE_OB_DIM)

    print("KERNEL_OK")
</pallas_src>

<mosaic_0001>
module attributes {stable_mosaic.version = 11 : i64} {
  func.func @_decoder_kernel(%arg0: i32, %arg1: memref<8x32xf32, #tpu.memory_space<vmem>>, %arg2: memref<32x400xbf16, #tpu.memory_space<vmem>>, %arg3: memref<1x400xf32, #tpu.memory_space<vmem>>, %arg4: memref<400x768xbf16, #tpu.memory_space<vmem>>, %arg5: memref<1x768xf32, #tpu.memory_space<vmem>>, %arg6: memref<32x32xf32, #tpu.memory_space<vmem>>, %arg7: memref<1x32xf32, #tpu.memory_space<vmem>>, %arg8: memref<32x32xf32, #tpu.memory_space<vmem>>, %arg9: memref<1x32xf32, #tpu.memory_space<vmem>>, %arg10: memref<32x16xf32, #tpu.memory_space<vmem>>, %arg11: memref<1x16xf32, #tpu.memory_space<vmem>>, %arg12: memref<8x768xf32, #tpu.memory_space<vmem>>, %arg13: memref<8x16xf32, #tpu.memory_space<vmem>>) attributes {dimension_semantics = [#tpu.dimension_semantics<parallel>], iteration_bounds = array<i64: 1>, scalar_prefetch = 0 : i64, scratch_operands = 0 : i64, tpu.core_type = #tpu.core_type<tc>, window_params = [{transform_indices = @transform_0, window_bounds = array<i64: 8, 32>}, {pipeline_mode = #tpu.pipeline_mode<synchronous>, transform_indices = @transform_1, window_bounds = array<i64: 32, 400>}, {pipeline_mode = #tpu.pipeline_mode<synchronous>, transform_indices = @transform_2, window_bounds = array<i64: 1, 400>}, {pipeline_mode = #tpu.pipeline_mode<synchronous>, transform_indices = @transform_3, window_bounds = array<i64: 400, 768>}, {pipeline_mode = #tpu.pipeline_mode<synchronous>, transform_indices = @transform_4, window_bounds = array<i64: 1, 768>}, {pipeline_mode = #tpu.pipeline_mode<synchronous>, transform_indices = @transform_5, window_bounds = array<i64: 32, 32>}, {pipeline_mode = #tpu.pipeline_mode<synchronous>, transform_indices = @transform_6, window_bounds = array<i64: 1, 32>}, {pipeline_mode = #tpu.pipeline_mode<synchronous>, transform_indices = @transform_7, window_bounds = array<i64: 32, 32>}, {pipeline_mode = #tpu.pipeline_mode<synchronous>, transform_indices = @transform_8, window_bounds = array<i64: 1, 32>}, {pipeline_mode = #tpu.pipeline_mode<synchronous>, transform_indices = @transform_9, window_bounds = array<i64: 32, 16>}, {pipeline_mode = #tpu.pipeline_mode<synchronous>, transform_indices = @transform_10, window_bounds = array<i64: 1, 16>}, {transform_indices = @transform_11, window_bounds = array<i64: 8, 768>}, {transform_indices = @transform_12, window_bounds = array<i64: 8, 16>}]} {
    %c0 = arith.constant 0 : index
    %c0_0 = arith.constant 0 : index
    %0 = vector.load %arg1[%c0, %c0_0] : memref<8x32xf32, #tpu.memory_space<vmem>>, vector<8x32xf32>
    %1 = arith.truncf %0 : vector<8x32xf32> to vector<8x32xbf16>
    %c0_1 = arith.constant 0 : index
    %c0_2 = arith.constant 0 : index
    %2 = vector.load %arg2[%c0_1, %c0_2] : memref<32x400xbf16, #tpu.memory_space<vmem>>, vector<32x400xbf16>
    %cst = arith.constant dense<0.000000e+00> : vector<8x400xf32>
    %3 = tpu.matmul %1, %2, %cst {dimension_numbers = #tpu.dot_dimension_numbers<[1], [0], [0], [1], [0, 0, 1, 1], [], []>} : vector<8x32xbf16>, vector<32x400xbf16>, vector<8x400xf32> -> vector<8x400xf32>
    %c0_3 = arith.constant 0 : index
    %c0_4 = arith.constant 0 : index
    %4 = vector.load %arg3[%c0_3, %c0_4] : memref<1x400xf32, #tpu.memory_space<vmem>>, vector<1x400xf32>
    %5 = vector.broadcast %4 : vector<1x400xf32> to vector<8x400xf32>
    %6 = arith.addf %3, %5 : vector<8x400xf32>
    %cst_5 = arith.constant 0.000000e+00 : f32
    %7 = vector.broadcast %cst_5 : f32 to vector<8x400xf32>
    %8 = arith.maximumf %6, %7 : vector<8x400xf32>
    %9 = arith.truncf %8 : vector<8x400xf32> to vector<8x400xbf16>
    %c0_6 = arith.constant 0 : index
    %c0_7 = arith.constant 0 : index
    %10 = vector.load %arg4[%c0_6, %c0_7] : memref<400x768xbf16, #tpu.memory_space<vmem>>, vector<400x768xbf16>
    %cst_8 = arith.constant dense<0.000000e+00> : vector<8x768xf32>
    %11 = tpu.matmul %9, %10, %cst_8 {dimension_numbers = #tpu.dot_dimension_numbers<[1], [0], [0], [1], [0, 0, 1, 1], [], []>} : vector<8x400xbf16>, vector<400x768xbf16>, vector<8x768xf32> -> vector<8x768xf32>
    %c0_9 = arith.constant 0 : index
    %c0_10 = arith.constant 0 : index
    %12 = vector.load %arg5[%c0_9, %c0_10] : memref<1x768xf32, #tpu.memory_space<vmem>>, vector<1x768xf32>
    %13 = vector.broadcast %12 : vector<1x768xf32> to vector<8x768xf32>
    %14 = arith.addf %11, %13 : vector<8x768xf32>
    %c0_11 = arith.constant 0 : index
    %c0_12 = arith.constant 0 : index
    %15 = vector.load %arg12[%c0_11, %c0_12] : memref<8x768xf32, #tpu.memory_space<vmem>>, vector<8x768xf32>
    tpu.vector_store %arg12[%c0_11, %c0_12], %14 {strides = array<i32>} : memref<8x768xf32, #tpu.memory_space<vmem>>, vector<8x768xf32>,
    %c0_13 = arith.constant 0 : index
    %c0_14 = arith.constant 0 : index
    %16 = vector.load %arg6[%c0_13, %c0_14] : memref<32x32xf32, #tpu.memory_space<vmem>>, vector<32x32xf32>
    %cst_15 = arith.constant dense<0.000000e+00> : vector<8x32xf32>
    %17 = tpu.matmul %0, %16, %cst_15 {dimension_numbers = #tpu.dot_dimension_numbers<[1], [0], [0], [1], [0, 0, 1, 1], [], []>} : vector<8x32xf32>, vector<32x32xf32>, vector<8x32xf32> -> vector<8x32xf32>
    %c0_16 = arith.constant 0 : index
    %c0_17 = arith.constant 0 : index
    %18 = vector.load %arg7[%c0_16, %c0_17] : memref<1x32xf32, #tpu.memory_space<vmem>>, vector<1x32xf32>
    %19 = vector.broadcast %18 : vector<1x32xf32> to vector<8x32xf32>
    %20 = arith.addf %17, %19 : vector<8x32xf32>
    %cst_18 = arith.constant 0.000000e+00 : f32
    %21 = vector.broadcast %cst_18 : f32 to vector<8x32xf32>
    %22 = arith.maximumf %20, %21 : vector<8x32xf32>
    %c0_19 = arith.constant 0 : index
    %c0_20 = arith.constant 0 : index
    %23 = vector.load %arg8[%c0_19, %c0_20] : memref<32x32xf32, #tpu.memory_space<vmem>>, vector<32x32xf32>
    %cst_21 = arith.constant dense<0.000000e+00> : vector<8x32xf32>
    %24 = tpu.matmul %22, %23, %cst_21 {dimension_numbers = #tpu.dot_dimension_numbers<[1], [0], [0], [1], [0, 0, 1, 1], [], []>} : vector<8x32xf32>, vector<32x32xf32>, vector<8x32xf32> -> vector<8x32xf32>
    %c0_22 = arith.constant 0 : index
    %c0_23 = arith.constant 0 : index
    %25 = vector.load %arg9[%c0_22, %c0_23] : memref<1x32xf32, #tpu.memory_space<vmem>>, vector<1x32xf32>
    %26 = vector.broadcast %25 : vector<1x32xf32> to vector<8x32xf32>
    %27 = arith.addf %24, %26 : vector<8x32xf32>
    %cst_24 = arith.constant 0.000000e+00 : f32
    %28 = vector.broadcast %cst_24 : f32 to vector<8x32xf32>
    %29 = arith.maximumf %27, %28 : vector<8x32xf32>
    %c0_25 = arith.constant 0 : index
    %c0_26 = arith.constant 0 : index
    %30 = vector.load %arg10[%c0_25, %c0_26] : memref<32x16xf32, #tpu.memory_space<vmem>>, vector<32x16xf32>
    %cst_27 = arith.constant dense<0.000000e+00> : vector<8x16xf32>
    %31 = tpu.matmul %29, %30, %cst_27 {dimension_numbers = #tpu.dot_dimension_numbers<[1], [0], [0], [1], [0, 0, 1, 1], [], []>} : vector<8x32xf32>, vector<32x16xf32>, vector<8x16xf32> -> vector<8x16xf32>
    %c0_28 = arith.constant 0 : index
    %c0_29 = arith.constant 0 : index
    %32 = vector.load %arg11[%c0_28, %c0_29] : memref<1x16xf32, #tpu.memory_space<vmem>>, vector<1x16xf32>
    %33 = vector.broadcast %32 : vector<1x16xf32> to vector<8x16xf32>
    %34 = arith.addf %31, %33 : vector<8x16xf32>
    %35 = tpu.iota {dimensions = array<i32: 1>} : vector<8x16xi32>
    %36 = math.tanh %34 : vector<8x16xf32>
    %cst_30 = arith.constant 1.000000e+00 : f32
    %37 = vector.broadcast %cst_30 : f32 to vector<8x16xf32>
    %38 = arith.addf %36, %37 : vector<8x16xf32>
    %cst_31 = arith.constant 0.699999988 : f32
    %39 = vector.broadcast %cst_31 : f32 to vector<8x16xf32>
    %40 = arith.mulf %38, %39 : vector<8x16xf32>
    %cst_32 = arith.constant 1.000000e-01 : f32
    %41 = vector.broadcast %cst_32 : f32 to vector<8x16xf32>
    %42 = arith.addf %40, %41 : vector<8x16xf32>
    %c8_i32 = arith.constant 8 : i32
    %43 = vector.broadcast %c8_i32 : i32 to vector<8x16xi32>
    %44 = arith.cmpi slt, %35, %43 : vector<8x16xi32>
    %45 = arith.select %44, %34, %42 : vector<8x16xi1>, vector<8x16xf32>
    %c0_33 = arith.constant 0 : index
    %c0_34 = arith.constant 0 : index
    %46 = vector.load %arg13[%c0_33, %c0_34] : memref<8x16xf32, #tpu.memory_space<vmem>>, vector<8x16xf32>
    tpu.vector_store %arg13[%c0_33, %c0_34], %45 {strides = array<i32>} : memref<8x16xf32, #tpu.memory_space<vmem>>, vector<8x16xf32>,
    return
  }
  func.func @transform_0(%arg0: i32) -> (i32, i32) {
    %c0_i32 = arith.constant 0 : i32
    %c0_i32_0 = arith.constant 0 : i32
    return %arg0, %c0_i32 : i32, i32
  }
  func.func @transform_1(%arg0: i32) -> (i32, i32) {
    %c0_i32 = arith.constant 0 : i32
    %c0_i32_0 = arith.constant 0 : i32
    %c0_i32_1 = arith.constant 0 : i32
    return %c0_i32, %c0_i32_0 : i32, i32
  }
  func.func @transform_2(%arg0: i32) -> (i32, i32) {
    %c0_i32 = arith.constant 0 : i32
    %c0_i32_0 = arith.constant 0 : i32
    %c0_i32_1 = arith.constant 0 : i32
    return %c0_i32, %c0_i32_0 : i32, i32
  }
  func.func @transform_3(%arg0: i32) -> (i32, i32) {
    %c0_i32 = arith.constant 0 : i32
    %c0_i32_0 = arith.constant 0 : i32
    %c0_i32_1 = arith.constant 0 : i32
    return %c0_i32, %c0_i32_0 : i32, i32
  }
  func.func @transform_4(%arg0: i32) -> (i32, i32) {
    %c0_i32 = arith.constant 0 : i32
    %c0_i32_0 = arith.constant 0 : i32
    %c0_i32_1 = arith.constant 0 : i32
    return %c0_i32, %c0_i32_0 : i32, i32
  }
  func.func @transform_5(%arg0: i32) -> (i32, i32) {
    %c0_i32 = arith.constant 0 : i32
    %c0_i32_0 = arith.constant 0 : i32
    %c0_i32_1 = arith.constant 0 : i32
    return %c0_i32, %c0_i32_0 : i32, i32
  }
  func.func @transform_6(%arg0: i32) -> (i32, i32) {
    %c0_i32 = arith.constant 0 : i32
    %c0_i32_0 = arith.constant 0 : i32
    %c0_i32_1 = arith.constant 0 : i32
    return %c0_i32, %c0_i32_0 : i32, i32
  }
  func.func @transform_7(%arg0: i32) -> (i32, i32) {
    %c0_i32 = arith.constant 0 : i32
    %c0_i32_0 = arith.constant 0 : i32
    %c0_i32_1 = arith.constant 0 : i32
    return %c0_i32, %c0_i32_0 : i32, i32
  }
  func.func @transform_8(%arg0: i32) -> (i32, i32) {
    %c0_i32 = arith.constant 0 : i32
    %c0_i32_0 = arith.constant 0 : i32
    %c0_i32_1 = arith.constant 0 : i32
    return %c0_i32, %c0_i32_0 : i32, i32
  }
  func.func @transform_9(%arg0: i32) -> (i32, i32) {
    %c0_i32 = arith.constant 0 : i32
    %c0_i32_0 = arith.constant 0 : i32
    %c0_i32_1 = arith.constant 0 : i32
    return %c0_i32, %c0_i32_0 : i32, i32
  }
  func.func @transform_10(%arg0: i32) -> (i32, i32) {
    %c0_i32 = arith.constant 0 : i32
    %c0_i32_0 = arith.constant 0 : i32
    %c0_i32_1 = arith.constant 0 : i32
    return %c0_i32, %c0_i32_0 : i32, i32
  }
  func.func @transform_11(%arg0: i32) -> (i32, i32) {
    %c0_i32 = arith.constant 0 : i32
    %c0_i32_0 = arith.constant 0 : i32
    return %arg0, %c0_i32 : i32, i32
  }
  func.func @transform_12(%arg0: i32) -> (i32, i32) {
    %c0_i32 = arith.constant 0 : i32
    %c0_i32_0 = arith.constant 0 : i32
    return %arg0, %c0_i32 : i32, i32
  }
}

</mosaic_0001>

<llo_original>
// kernel: decoder_forward.1
$region0: #{decoder_forward.1}
  #allocation0 [shape = 'u32[]', space=smem, size = 0x4, offset = 0x4, fixed_abs, tag = 'smem constant byte address 0x4 - core index']
  #allocation1 [shape = 'u32[144,128]{1,0:T(1,128)}', space=vmem, size = 0x12000, scoped, tag = 'internal scratch']
  %s0 = inlined_call_operand.vmem [shape: f32[8,32], index: 0, kind: input, shape index: {}]
  %s1 = inlined_call_operand.vmem [shape: bf16[32,400], index: 1, kind: input, shape index: {}]
  %s2 = inlined_call_operand.hbm [shape: f32[1,400], index: 2, kind: input, shape index: {}]
  %s3 = inlined_call_operand.hbm [shape: bf16[400,768], index: 3, kind: input, shape index: {}]
  %s4 = inlined_call_operand.vmem [shape: f32[1,768], index: 4, kind: input, shape index: {}]
  %s5 = inlined_call_operand.hbm [shape: f32[32,32], index: 5, kind: input, shape index: {}]
  %s6 = inlined_call_operand.vmem [shape: f32[1,32], index: 6, kind: input, shape index: {}]
  %s7 = inlined_call_operand.hbm [shape: f32[32,32], index: 7, kind: input, shape index: {}]
  %s8 = inlined_call_operand.hbm [shape: f32[1,32], index: 8, kind: input, shape index: {}]
  %s9 = inlined_call_operand.vmem [shape: f32[32,16], index: 9, kind: input, shape index: {}]
  %s10 = inlined_call_operand.hbm [shape: f32[1,16], index: 10, kind: input, shape index: {}]
  %s11 = inlined_call_operand.vmem [shape: f32[8,768], index: 11, kind: output, shape index: {0}]
  %s12 = inlined_call_operand.vmem [shape: f32[8,16], index: 12, kind: output, shape index: {1}]
  %13 = xla_tuple %s11, %s12
  %s14 = sld [smem:[#allocation0]]
  $region86: #{decoder_forward.1} parent=0
    _
  %s16 = ssub.s32 1, %s14
  %s17 = scalar_select 0, %s16, %s14
  $region1: #{decoder_forward.1} parent=0
    #allocation2 [shape = 'u8[2048]{0}', space=vmem, size = 0x800, scoped, tag = 'input window, operand 2, single buffered']
    #allocation3 [shape = 's32[1]{0}', space=sflag, size = 0x4, scoped, tag = 'scoped memory for decoder_forward.1']
    #allocation4 [shape = 'u8[614400]{0}', space=vmem, size = 0x96000, scoped, tag = 'input window, operand 3, single buffered']
    #allocation5 [shape = 's32[1]{0}', space=sflag, size = 0x4, scoped, tag = 'scoped memory for decoder_forward.1']
    #allocation6 [shape = 'u8[16384]{0}', space=vmem, size = 0x4000, scoped, tag = 'input window, operand 5, single buffered']
    #allocation7 [shape = 'u8[16384]{0}', space=vmem, size = 0x4000, scoped, tag = 'input window, operand 7, single buffered']
    #allocation8 [shape = 's32[1]{0}', space=sflag, size = 0x4, scoped, tag = 'scoped memory for decoder_forward.1']
    #allocation9 [shape = 'u8[512]{0}', space=vmem, size = 0x400, scoped, tag = 'input window, operand 8, single buffered']
    #allocation10 [shape = 'u8[512]{0}', space=vmem, size = 0x400, scoped, tag = 'input window, operand 10, single buffered']
    #allocation11 [shape = 's32[1]{0}', space=sflag, size = 0x4, scoped, tag = 'scoped memory for decoder_forward.1']
    %18 = vsyncpa [#allocation3], 0
    %19 = vsyncpa [#allocation5], 0
    %20 = vsyncpa [#allocation8], 0
    %21 = vsyncpa [#allocation11], 0
    // Predicated region
    $region2: #{decoder_forward.1} parent=1 // pred_check
      _
    $region3: #{decoder_forward.1} parent=1 // pred_check_branch
      %23 = sbr.rel (0) target = $region5
    $region4: #{decoder_forward.1} parent=1 // pred_region
      _
    $region5: #{decoder_forward.1} parent=1 // pred_fallthru
      _
    // Predicated region
    $region6: #{decoder_forward.1} parent=1 // pred_check
      _
    $region7: #{decoder_forward.1} parent=1 // pred_check_branch
      %25 = sbr.rel (0) target = $region9
    $region8: #{decoder_forward.1} parent=1 // pred_region
      _
    $region9: #{decoder_forward.1} parent=1 // pred_fallthru
      _
    // Predicated region
    $region10: #{decoder_forward.1} parent=1 // pred_check
      _
    $region11: #{decoder_forward.1} parent=1 // pred_check_branch
      %27 = sbr.rel (0) target = $region13
    $region12: #{decoder_forward.1} parent=1 // pred_region
      %s29 = ssub.s32 64, 64
      %30 = vsyncadd [#allocation3], %s29
      %s32 = sshll.u32 [#allocation2], 4
      %s33 = int_to_ptr.vmem [resolvable:$true] %s32
      %35 = dma.hbm_to_vmem [thread:$0]  %s2, 64, %s33, [#allocation3]
    $region13: #{decoder_forward.1} parent=1 // pred_fallthru
      _
    // Predicated region
    $region14: #{decoder_forward.1} parent=1 // pred_check
      _
    $region15: #{decoder_forward.1} parent=1 // pred_check_branch
      %37 = sbr.rel (0) target = $region17
    $region16: #{decoder_forward.1} parent=1 // pred_region
      %s39 = ssub.s32 19200, 19200
      %40 = vsyncadd [#allocation5], %s39
      %s41 = sshll.u32 [#allocation4], 4
      %s42 = int_to_ptr.vmem [resolvable:$true] %s41
      %47 = dma.hbm_to_vmem [thread:$0]  %s3, 19200, %s42, [#allocation5], 384, 384, 24
    $region17: #{decoder_forward.1} parent=1 // pred_fallthru
      _
    // Predicated region
    $region18: #{decoder_forward.1} parent=1 // pred_check
      _
    $region19: #{decoder_forward.1} parent=1 // pred_check_branch
      %49 = sbr.rel (0) target = $region21
    $region20: #{decoder_forward.1} parent=1 // pred_region
      _
    $region21: #{decoder_forward.1} parent=1 // pred_fallthru
      _
    // Predicated region
    $region22: #{decoder_forward.1} parent=1 // pred_check
      _
    $region23: #{decoder_forward.1} parent=1 // pred_check_branch
      %51 = sbr.rel (0) target = $region25
    $region24: #{decoder_forward.1} parent=1 // pred_region
      %s53 = ssub.s32 512, 512
      %54 = vsyncadd [#allocation5], %s53
      %s55 = sshll.u32 [#allocation6], 4
      %s56 = int_to_ptr.vmem [resolvable:$true] %s55
      %61 = dma.hbm_to_vmem [thread:$0]  %s5, 512, %s56, [#allocation5], 128, 128, 8
    $region25: #{decoder_forward.1} parent=1 // pred_fallthru
      _
    // Predicated region
    $region26: #{decoder_forward.1} parent=1 // pred_check
      _
    $region27: #{decoder_forward.1} parent=1 // pred_check_branch
      %63 = sbr.rel (0) target = $region29
    $region28: #{decoder_forward.1} parent=1 // pred_region
      _
    $region29: #{decoder_forward.1} parent=1 // pred_fallthru
      _
    // Predicated region
    $region30: #{decoder_forward.1} parent=1 // pred_check
      _
    $region31: #{decoder_forward.1} parent=1 // pred_check_branch
      %65 = sbr.rel (0) target = $region33
    $region32: #{decoder_forward.1} parent=1 // pred_region
      %s67 = ssub.s32 512, 512
      %68 = vsyncadd [#allocation8], %s67
      %s69 = sshll.u32 [#allocation7], 4
      %s70 = int_to_ptr.vmem [resolvable:$true] %s69
      %75 = dma.hbm_to_vmem [thread:$0]  %s7, 512, %s70, [#allocation8], 128, 128, 8
    $region33: #{decoder_forward.1} parent=1 // pred_fallthru
      _
    // Predicated region
    $region34: #{decoder_forward.1} parent=1 // pred_check
      _
    $region35: #{decoder_forward.1} parent=1 // pred_check_branch
      %77 = sbr.rel (0) target = $region37
    $region36: #{decoder_forward.1} parent=1 // pred_region
      %s79 = ssub.s32 16, 16
      %80 = vsyncadd [#allocation8], %s79
      %s82 = sshll.u32 [#allocation9], 4
      %s83 = int_to_ptr.vmem [resolvable:$true] %s82
      %85 = dma.hbm_to_vmem [thread:$0]  %s8, 16, %s83, [#allocation8]
    $region37: #{decoder_forward.1} parent=1 // pred_fallthru
      _
    // Predicated region
    $region38: #{decoder_forward.1} parent=1 // pred_check
      _
    $region39: #{decoder_forward.1} parent=1 // pred_check_branch
      %87 = sbr.rel (0) target = $region41
    $region40: #{decoder_forward.1} parent=1 // pred_region
      _
    $region41: #{decoder_forward.1} parent=1 // pred_fallthru
      _
    // Predicated region
    $region42: #{decoder_forward.1} parent=1 // pred_check
      _
    $region43: #{decoder_forward.1} parent=1 // pred_check_branch
      %89 = sbr.rel (0) target = $region45
    $region44: #{decoder_forward.1} parent=1 // pred_region
      %s91 = ssub.s32 16, 16
      %92 = vsyncadd [#allocation11], %s91
      %s94 = sshll.u32 [#allocation10], 4
      %s95 = int_to_ptr.vmem [resolvable:$true] %s94
      %97 = dma.hbm_to_vmem [thread:$0]  %s10, 16, %s95, [#allocation11]
    $region45: #{decoder_forward.1} parent=1 // pred_fallthru
      _
    // Predicated region
    $region46: #{decoder_forward.1} parent=1 // pred_check
      _
    $region47: #{decoder_forward.1} parent=1 // pred_check_branch
      %99 = sbr.rel (0) target = $region49
    $region48: #{decoder_forward.1} parent=1 // pred_region
      %100 = dma.done [#allocation3], 64
    $region49: #{decoder_forward.1} parent=1 // pred_fallthru
      _
    // Predicated region
    $region50: #{decoder_forward.1} parent=1 // pred_check
      _
    $region51: #{decoder_forward.1} parent=1 // pred_check_branch
      %102 = sbr.rel (0) target = $region53
    $region52: #{decoder_forward.1} parent=1 // pred_region
      %103 = dma.done [#allocation5], 19200
    $region53: #{decoder_forward.1} parent=1 // pred_fallthru
      _
    // Predicated region
    $region54: #{decoder_forward.1} parent=1 // pred_check
      _
    $region55: #{decoder_forward.1} parent=1 // pred_check_branch
      %105 = sbr.rel (0) target = $region57
    $region56: #{decoder_forward.1} parent=1 // pred_region
      %106 = dma.done [#allocation5], 512
    $region57: #{decoder_forward.1} parent=1 // pred_fallthru
      _
    // Predicated region
    $region58: #{decoder_forward.1} parent=1 // pred_check
      _
    $region59: #{decoder_forward.1} parent=1 // pred_check_branch
      %108 = sbr.rel (0) target = $region61
    $region60: #{decoder_forward.1} parent=1 // pred_region
      %109 = dma.done [#allocation8], 512
    $region61: #{decoder_forward.1} parent=1 // pred_fallthru
      _
    // Predicated region
    $region62: #{decoder_forward.1} parent=1 // pred_check
      _
    $region63: #{decoder_forward.1} parent=1 // pred_check_branch
      %111 = sbr.rel (0) target = $region65
    $region64: #{decoder_forward.1} parent=1 // pred_region
      %112 = dma.done [#allocation8], 16
    $region65: #{decoder_forward.1} parent=1 // pred_fallthru
      _
    // Predicated region
    $region66: #{decoder_forward.1} parent=1 // pred_check
      _
    $region67: #{decoder_forward.1} parent=1 // pred_check_branch
      %114 = sbr.rel (0) target = $region69
    $region68: #{decoder_forward.1} parent=1 // pred_region
      %115 = dma.done [#allocation11], 16
    $region69: #{decoder_forward.1} parent=1 // pred_fallthru
      _
    %v117 = vld [vmem:[%s0] sm:$0xff]
    %v118 = vpack.c.bf16 %v117, %v117
    %v119 = vld [vmem:[%s1] sm:$0xff]
    %v120 = vld [vmem:[%s1 + $0x8] sm:$0xff]
    %v121 = vld [vmem:[%s1 + $0x10] sm:$0xff]
    %v122 = vld [vmem:[%s1 + $0x18] sm:$0xff]
    %v123 = vld [vmem:[%s1 + $0x20] sm:$0xff]
    %v124 = vld [vmem:[%s1 + $0x28] sm:$0xff]
    %v125 = vld [vmem:[%s1 + $0x30] sm:$0xff]
    %v126 = vld [vmem:[%s1 + $0x38] sm:$0xff]
    %v127 = vld [vmem:[#allocation2] sm:$0xf]
    %v129 = vlaneseq
    %v130 = vshrl.u32 %v129, 7
    %v131 = vsub.s32 0, %v130
    %v132 = vrot.slane %v127, %v131
    %v133 = vlaneseq
    %v134 = vshrl.u32 %v133, 7
    %v135 = vsub.s32 1, %v134
    %v136 = vrot.slane %v127, %v135
    %v137 = vlaneseq
    %v138 = vshrl.u32 %v137, 7
    %v139 = vsub.s32 2, %v138
    %v140 = vrot.slane %v127, %v139
    %v141 = vlaneseq
    %v142 = vshrl.u32 %v141, 7
    %v143 = vsub.s32 3, %v142
    %v144 = vrot.slane %v127, %v143
    %v157 = vunpack.c.l.b16 %v119
    %v158 = vunpack.c.h.b16 %v119
    %v159 = vunpack.c.l.b16 %v120
    %v160 = vunpack.c.h.b16 %v120
    %v161 = vunpack.c.l.b16 %v121
    %v162 = vunpack.c.h.b16 %v121
    %v163 = vunpack.c.l.b16 %v122
    %v164 = vunpack.c.h.b16 %v122
    %v165 = vunpack.c.l.b16 %v123
    %v166 = vunpack.c.h.b16 %v123
    %v167 = vunpack.c.l.b16 %v124
    %v168 = vunpack.c.h.b16 %v124
    %v169 = vunpack.c.l.b16 %v125
    %v170 = vunpack.c.h.b16 %v125
    %v171 = vunpack.c.l.b16 %v126
    %v172 = vunpack.c.h.b16 %v126
    %v173 = vpack.c.b16 %v161, %v157
    %v174 = vpack.c.b16 %v162, %v158
    %v175 = vpack.c.b16 %v163, %v159
    %v176 = vpack.c.b16 %v164, %v160
    %v177 = vpack.c.b16 %v169, %v165
    %v178 = vpack.c.b16 %v170, %v166
    %v179 = vpack.c.b16 %v171, %v167
    %v180 = vpack.c.b16 %v172, %v168
    %vm189 = vcmask 261120
    %v191 = vsel %vm189, %v118, 0
    %193 = vmatprep.subr.bf16.mxu0 %v174
    %194 = vmatpush1.bf16.msra.mxu0 %v173
    %195 = vmatprep.subr.bf16.mxu0 %v178
    %196 = vmatpush1.bf16.msra.mxu0 %v177
    %197 = vmatprep.subr.bf16.mxu0 0
    %198 = vmatpush1.bf16.msra.mxu0 0
    %199 = vmatprep.subr.bf16.mxu0 0
    %200 = vmatpush1.bf16.msra.mxu0 0
    %201 = vmatprep.subr.bf16.mxu0 0
    %202 = vmatpush1.bf16.msra.mxu0 0
    %203 = vmatprep.subr.bf16.mxu0 0
    %204 = vmatpush1.bf16.msra.mxu0 0
    %205 = vmatprep.subr.bf16.mxu0 0
    %206 = vmatpush1.bf16.msra.mxu0 0
    %207 = vmatprep.subr.bf16.mxu0 0
    %208 = vmatpush1.bf16.msra.mxu0 0
    %209 = vmatprep.subr.bf16.mxu0 0
    %210 = vmatpush1.bf16.msra.mxu0 0
    %211 = vmatprep.subr.bf16.mxu0 0
    %212 = vmatpush1.bf16.msra.mxu0 0
    %213 = vmatprep.subr.bf16.mxu0 0
    %214 = vmatpush1.bf16.msra.mxu0 0
    %215 = vmatprep.subr.bf16.mxu0 0
    %216 = vmatpush1.bf16.msra.mxu0 0
    %217 = vmatprep.subr.bf16.mxu0 0
    %218 = vmatpush1.bf16.msra.mxu0 0
    %219 = vmatprep.subr.bf16.mxu0 0
    %220 = vmatpush1.bf16.msra.mxu0 0
    %221 = vmatprep.subr.bf16.mxu0 0
    %222 = vmatpush1.bf16.msra.mxu0 0
    %223 = vmatprep.subr.bf16.mxu0 0
    %224 = vmatpush1.bf16.msra.mxu0 0
    %225 = vmatprep.mubr.bf16.mxu0 0
    %226 = vmatmul.mubr.bf16.gmra.mrb[0].mxu0 %v191
    %v227 = vpop.f32.mrb[0].mxu0
    %v228 = vadd.f32 %v132, %v227
    %v229 = vpop.f32.mrb[0].mxu0
    %v230 = vadd.f32 %v136, %v229
    %v231 = vpop.f32.mrb[0].mxu0
    %v232 = vpop.f32.mrb[0].mxu0
    %233 = vdwg.mxu0
    %234 = vmatprep.subr.bf16.mxu0 %v176
    %235 = vmatpush1.bf16.msra.mxu0 %v175
    %236 = vmatprep.subr.bf16.mxu0 %v180
    %237 = vmatpush1.bf16.msra.mxu0 %v179
    %238 = vmatprep.subr.bf16.mxu0 0
    %239 = vmatpush1.bf16.msra.mxu0 0
    %240 = vmatprep.subr.bf16.mxu0 0
    %241 = vmatpush1.bf16.msra.mxu0 0
    %242 = vmatprep.subr.bf16.mxu0 0
    %243 = vmatpush1.bf16.msra.mxu0 0
    %244 = vmatprep.subr.bf16.mxu0 0
    %245 = vmatpush1.bf16.msra.mxu0 0
    %246 = vmatprep.subr.bf16.mxu0 0
    %247 = vmatpush1.bf16.msra.mxu0 0
    %248 = vmatprep.subr.bf16.mxu0 0
    %249 = vmatpush1.bf16.msra.mxu0 0
    %250 = vmatprep.subr.bf16.mxu0 0
    %251 = vmatpush1.bf16.msra.mxu0 0
    %252 = vmatprep.subr.bf16.mxu0 0
    %253 = vmatpush1.bf16.msra.mxu0 0
    %254 = vmatprep.subr.bf16.mxu0 0
    %255 = vmatpush1.bf16.msra.mxu0 0
    %256 = vmatprep.subr.bf16.mxu0 0
    %257 = vmatpush1.bf16.msra.mxu0 0
    %258 = vmatprep.subr.bf16.mxu0 0
    %259 = vmatpush1.bf16.msra.mxu0 0
    %260 = vmatprep.subr.bf16.mxu0 0
    %261 = vmatpush1.bf16.msra.mxu0 0
    %262 = vmatprep.subr.bf16.mxu0 0
    %263 = vmatpush1.bf16.msra.mxu0 0
    %264 = vmatprep.subr.bf16.mxu0 0
    %265 = vmatpush1.bf16.msra.mxu0 0
    %266 = vmatprep.mubr.bf16.mxu0 0
    %267 = vmatmul.mubr.bf16.gmra.mrb[0].mxu0 %v191
    %v268 = vpop.f32.mrb[0].mxu0
    %v269 = vadd.f32 %v140, %v268
    %v270 = vpop.f32.mrb[0].mxu0
    %v271 = vadd.f32 %v144, %v270
    %v272 = vpop.f32.mrb[0].mxu0
    %v273 = vpop.f32.mrb[0].mxu0
    %274 = vdwg.mxu0
    %v275 = vmax.f32 %v228, 0.0
    %v276 = vmax.f32 %v230, 0.0
    %v277 = vmax.f32 %v269, 0.0
    %v278 = vmax.f32 %v271, 0.0
    %v279 = vpack.c.bf16 %v275, %v275
    %v280 = vpack.c.bf16 %v276, %v276
    %v281 = vpack.c.bf16 %v277, %v277
    %v282 = vpack.c.bf16 %v278, %v278
    %v283 = vld [vmem:[#allocation4] sm:$0xff]
    %v284 = vld [vmem:[#allocation4 + $0x8] sm:$0xff]
    %v285 = vld [vmem:[#allocation4 + $0x10] sm:$0xff]
    %v286 = vld [vmem:[#allocation4 + $0x18] sm:$0xff]
    %v287 = vld [vmem:[#allocation4 + $0x20] sm:$0xff]
    %v288 = vld [vmem:[#allocation4 + $0x28] sm:$0xff]
    %v289 = vld [vmem:[#allocation4 + $0x30] sm:$0xff]
    %v290 = vld [vmem:[#allocation4 + $0x38] sm:$0xff]
    %v291 = vld [vmem:[#allocation4 + $0x40] sm:$0xff]
    %v292 = vld [vmem:[#allocation4 + $0x48] sm:$0xff]
    %v293 = vld [vmem:[#allocation4 + $0x50] sm:$0xff]
    %v294 = vld [vmem:[#allocation4 + $0x58] sm:$0xff]
    %v295 = vld [vmem:[#allocation4 + $0x60] sm:$0xff]
    %v296 = vld [vmem:[#allocation4 + $0x68] sm:$0xff]
    %v297 = vld [vmem:[#allocation4 + $0x70] sm:$0xff]
    %v298 = vld [vmem:[#allocation4 + $0x78] sm:$0xff]
    %v299 = vld [vmem:[#allocation4 + $0x80] sm:$0xff]
    %v300 = vld [vmem:[#allocation4 + $0x88] sm:$0xff]
    %v301 = vld [vmem:[#allocation4 + $0x90] sm:$0xff]
    %v302 = vld [vmem:[#allocation4 + $0x98] sm:$0xff]
    %v303 = vld [vmem:[#allocation4 + $0xa0] sm:$0xff]
    %v304 = vld [vmem:[#allocation4 + $0xa8] sm:$0xff]
    %v305 = vld [vmem:[#allocation4 + $0xb0] sm:$0xff]
    %v306 = vld [vmem:[#allocation4 + $0xb8] sm:$0xff]
    %v307 = vld [vmem:[#allocation4 + $0xc0] sm:$0xff]
    %v308 = vld [vmem:[#allocation4 + $0xc8] sm:$0xff]
    %v309 = vld [vmem:[#allocation4 + $0xd0] sm:$0xff]
    %v310 = vld [vmem:[#allocation4 + $0xd8] sm:$0xff]
    %v311 = vld [vmem:[#allocation4 + $0xe0] sm:$0xff]
    %v312 = vld [vmem:[#allocation4 + $0xe8] sm:$0xff]
    %v313 = vld [vmem:[#allocation4 + $0xf0] sm:$0xff]
    %v314 = vld [vmem:[#allocation4 + $0xf8] sm:$0xff]
    %v315 = vld [vmem:[#allocation4 + $0x100] sm:$0xff]
    %v316 = vld [vmem:[#allocation4 + $0x108] sm:$0xff]
    %v317 = vld [vmem:[#allocation4 + $0x110] sm:$0xff]
    %v318 = vld [vmem:[#allocation4 + $0x118] sm:$0xff]
    %v319 = vld [vmem:[#allocation4 + $0x120] sm:$0xff]
    %v320 = vld [vmem:[#allocation4 + $0x128] sm:$0xff]
    %v321 = vld [vmem:[#allocation4 + $0x130] sm:$0xff]
    %v322 = vld [vmem:[#allocation4 + $0x138] sm:$0xff]
    %v323 = vld [vmem:[#allocation4 + $0x140] sm:$0xff]
    %v324 = vld [vmem:[#allocation4 + $0x148] sm:$0xff]
    %v325 = vld [vmem:[#allocation4 + $0x150] sm:$0xff]
    %v326 = vld [vmem:[#allocation4 + $0x158] sm:$0xff]
    %v327 = vld [vmem:[#allocation4 + $0x160] sm:$0xff]
    %v328 = vld [vmem:[#allocation4 + $0x168] sm:$0xff]
    %v329 = vld [vmem:[#allocation4 + $0x170] sm:$0xff]
    %v330 = vld [vmem:[#allocation4 + $0x178] sm:$0xff]
    %v331 = vld [vmem:[#allocation4 + $0x180] sm:$0xff]
    %v332 = vld [vmem:[#allocation4 + $0x188] sm:$0xff]
    %v333 = vld [vmem:[#allocation4 + $0x190] sm:$0xff]
    %v334 = vld [vmem:[#allocation4 + $0x198] sm:$0xff]
    %v335 = vld [vmem:[#allocation4 + $0x1a0] sm:$0xff]
    %v336 = vld [vmem:[#allocation4 + $0x1a8] sm:$0xff]
    %v337 = vld [vmem:[#allocation4 + $0x1b0] sm:$0xff]
    %v338 = vld [vmem:[#allocation4 + $0x1b8] sm:$0xff]
    %v339 = vld [vmem:[#allocation4 + $0x1c0] sm:$0xff]
    %v340 = vld [vmem:[#allocation4 + $0x1c8] sm:$0xff]
    %v341 = vld [vmem:[#allocation4 + $0x1d0] sm:$0xff]
    %v342 = vld [vmem:[#allocation4 + $0x1d8] sm:$0xff]
    %v343 = vld [vmem:[#allocation4 + $0x1e0] sm:$0xff]
    %v344 = vld [vmem:[#allocation4 + $0x1e8] sm:$0xff]
    %v345 = vld [vmem:[#allocation4 + $0x1f0] sm:$0xff]
    %v346 = vld [vmem:[#allocation4 + $0x1f8] sm:$0xff]
    %v347 = vld [vmem:[#allocation4 + $0x200] sm:$0xff]
    %v348 = vld [vmem:[#allocation4 + $0x208] sm:$0xff]
    %v349 = vld [vmem:[#allocation4 + $0x210] sm:$0xff]
    %v350 = vld [vmem:[#allocation4 + $0x218] sm:$0xff]
    %v351 = vld [vmem:[#allocation4 + $0x220] sm:$0xff]
    %v352 = vld [vmem:[#allocation4 + $0x228] sm:$0xff]
    %v353 = vld [vmem:[#allocation4 + $0x230] sm:$0xff]
    %v354 = vld [vmem:[#allocation4 + $0x238] sm:$0xff]
    %v355 = vld [vmem:[#allocation4 + $0x240] sm:$0xff]
    %v356 = vld [vmem:[#allocation4 + $0x248] sm:$0xff]
    %v357 = vld [vmem:[#allocation4 + $0x250] sm:$0xff]
    %v358 = vld [vmem:[#allocation4 + $0x258] sm:$0xff]
    %v359 = vld [vmem:[#allocation4 + $0x260] sm:$0xff]
    %v360 = vld [vmem:[#allocation4 + $0x268] sm:$0xff]
    %v361 = vld [vmem:[#allocation4 + $0x270] sm:$0xff]
    %v362 = vld [vmem:[#allocation4 + $0x278] sm:$0xff]
    %v363 = vld [vmem:[#allocation4 + $0x280] sm:$0xff]
    %v364 = vld [vmem:[#allocation4 + $0x288] sm:$0xff]
    %v365 = vld [vmem:[#allocation4 + $0x290] sm:$0xff]
    %v366 = vld [vmem:[#allocation4 + $0x298] sm:$0xff]
    %v367 = vld [vmem:[#allocation4 + $0x2a0] sm:$0xff]
    %v368 = vld [vmem:[#allocation4 + $0x2a8] sm:$0xff]
    %v369 = vld [vmem:[#allocation4 + $0x2b0] sm:$0xff]
    %v370 = vld [vmem:[#allocation4 + $0x2b8] sm:$0xff]
    %v371 = vld [vmem:[#allocation4 + $0x2c0] sm:$0xff]
    %v372 = vld [vmem:[#allocation4 + $0x2c8] sm:$0xff]
    %v373 = vld [vmem:[#allocation4 + $0x2d0] sm:$0xff]
    %v374 = vld [vmem:[#allocation4 + $0x2d8] sm:$0xff]
    %v375 = vld [vmem:[#allocation4 + $0x2e0] sm:$0xff]
    %v376 = vld [vmem:[#allocation4 + $0x2e8] sm:$0xff]
    %v377 = vld [vmem:[#allocation4 + $0x2f0] sm:$0xff]
    %v378 = vld [vmem:[#allocation4 + $0x2f8] sm:$0xff]
    %v379 = vld [vmem:[#allocation4 + $0x300] sm:$0xff]
    %v380 = vld [vmem:[#allocation4 + $0x308] sm:$0xff]
    %v381 = vld [vmem:[#allocation4 + $0x310] sm:$0xff]
    %v382 = vld [vmem:[#allocation4 + $0x318] sm:$0xff]
    %v383 = vld [vmem:[#allocation4 + $0x320] sm:$0xff]
    %v384 = vld [vmem:[#allocation4 + $0x328] sm:$0xff]
    %v385 = vld [vmem:[#allocation4 + $0x330] sm:$0xff]
    %v386 = vld [vmem:[#allocation4 + $0x338] sm:$0xff]
    %v387 = vld [vmem:[#allocation4 + $0x340] sm:$0xff]
    %v388 = vld [vmem:[#allocation4 + $0x348] sm:$0xff]
    %v389 = vld [vmem:[#allocation4 + $0x350] sm:$0xff]
    %v390 = vld [vmem:[#allocation4 + $0x358] sm:$0xff]
    %v391 = vld [vmem:[#allocation4 + $0x360] sm:$0xff]
    %v392 = vld [vmem:[#allocation4 + $0x368] sm:$0xff]
    %v393 = vld [vmem:[#allocation4 + $0x370] sm:$0xff]
    %v394 = vld [vmem:[#allocation4 + $0x378] sm:$0xff]
    %v395 = vld [vmem:[#allocation4 + $0x380] sm:$0xff]
    %v396 = vld [vmem:[#allocation4 + $0x388] sm:$0xff]
    %v397 = vld [vmem:[#allocation4 + $0x390] sm:$0xff]
    %v398 = vld [vmem:[#allocation4 + $0x398] sm:$0xff]
    %v399 = vld [vmem:[#allocation4 + $0x3a0] sm:$0xff]
    %v400 = vld [vmem:[#allocation4 + $0x3a8] sm:$0xff]
    %v401 = vld [vmem:[#allocation4 + $0x3b0] sm:$0xff]
    %v402 = vld [vmem:[#allocation4 + $0x3b8] sm:$0xff]
    %v403 = vld [vmem:[#allocation4 + $0x3c0] sm:$0xff]
    %v404 = vld [vmem:[#allocation4 + $0x3c8] sm:$0xff]
    %v405 = vld [vmem:[#allocation4 + $0x3d0] sm:$0xff]
    %v406 = vld [vmem:[#allocation4 + $0x3d8] sm:$0xff]
    %v407 = vld [vmem:[#allocation4 + $0x3e0] sm:$0xff]
    %v408 = vld [vmem:[#allocation4 + $0x3e8] sm:$0xff]
    %v409 = vld [vmem:[#allocation4 + $0x3f0] sm:$0xff]
    %v410 = vld [vmem:[#allocation4 + $0x3f8] sm:$0xff]
    %v411 = vld [vmem:[#allocation4 + $0x400] sm:$0xff]
    %v412 = vld [vmem:[#allocation4 + $0x408] sm:$0xff]
    %v413 = vld [vmem:[#allocation4 + $0x410] sm:$0xff]
    %v414 = vld [vmem:[#allocation4 + $0x418] sm:$0xff]
    %v415 = vld [vmem:[#allocation4 + $0x420] sm:$0xff]
    %v416 = vld [vmem:[#allocation4 + $0x428] sm:$0xff]
    %v417 = vld [vmem:[#allocation4 + $0x430] sm:$0xff]
    %v418 = vld [vmem:[#allocation4 + $0x438] sm:$0xff]
    %v419 = vld [vmem:[#allocation4 + $0x440] sm:$0xff]
    %v420 = vld [vmem:[#allocation4 + $0x448] sm:$0xff]
    %v421 = vld [vmem:[#allocation4 + $0x450] sm:$0xff]
    %v422 = vld [vmem:[#allocation4 + $0x458] sm:$0xff]
    %v423 = vld [vmem:[#allocation4 + $0x460] sm:$0xff]
    %v424 = vld [vmem:[#allocation4 + $0x468] sm:$0xff]
    %v425 = vld [vmem:[#allocation4 + $0x470] sm:$0xff]
    %v426 = vld [vmem:[#allocation4 + $0x478] sm:$0xff]
    %v427 = vld [vmem:[#allocation4 + $0x480] sm:$0xff]
    %v428 = vld [vmem:[#allocation4 + $0x488] sm:$0xff]
    %v429 = vld [vmem:[#allocation4 + $0x490] sm:$0xff]
    %v430 = vld [vmem:[#allocation4 + $0x498] sm:$0xff]
    %v431 = vld [vmem:[#allocation4 + $0x4a0] sm:$0xff]
    %v432 = vld [vmem:[#allocation4 + $0x4a8] sm:$0xff]
    %v433 = vld [vmem:[%s4] sm:$0x3f]
    %v435 = vlaneseq
    %v436 = vshrl.u32 %v435, 7
    %v437 = vsub.s32 0, %v436
    %v438 = vrot.slane %v433, %v437
    %v439 = vlaneseq
    %v440 = vshrl.u32 %v439, 7
    %v441 = vsub.s32 1, %v440
    %v442 = vrot.slane %v433, %v441
    %v443 = vlaneseq
    %v444 = vshrl.u32 %v443, 7
    %v445 = vsub.s32 2, %v444
    %v446 = vrot.slane %v433, %v445
    %v447 = vlaneseq
    %v448 = vshrl.u32 %v447, 7
    %v449 = vsub.s32 3, %v448
    %v450 = vrot.slane %v433, %v449
    %v451 = vlaneseq
    %v452 = vshrl.u32 %v451, 7
    %v453 = vsub.s32 4, %v452
    %v454 = vrot.slane %v433, %v453
    %v455 = vlaneseq
    %v456 = vshrl.u32 %v455, 7
    %v457 = vsub.s32 5, %v456
    %v458 = vrot.slane %v433, %v457
    %v615 = vunpack.c.l.b16 %v283
    %v616 = vunpack.c.h.b16 %v283
    %v617 = vunpack.c.l.b16 %v284
    %v618 = vunpack.c.h.b16 %v284
    %v619 = vunpack.c.l.b16 %v285
    %v620 = vunpack.c.h.b16 %v285
    %v621 = vunpack.c.l.b16 %v286
    %v622 = vunpack.c.h.b16 %v286
    %v623 = vunpack.c.l.b16 %v287
    %v624 = vunpack.c.h.b16 %v287
    %v625 = vunpack.c.l.b16 %v288
    %v626 = vunpack.c.h.b16 %v288
    %v627 = vunpack.c.l.b16 %v289
    %v628 = vunpack.c.h.b16 %v289
    %v629 = vunpack.c.l.b16 %v290
    %v630 = vunpack.c.h.b16 %v290
    %v631 = vunpack.c.l.b16 %v291
    %v632 = vunpack.c.h.b16 %v291
    %v633 = vunpack.c.l.b16 %v292
    %v634 = vunpack.c.h.b16 %v292
    %v635 = vunpack.c.l.b16 %v293
    %v636 = vunpack.c.h.b16 %v293
    %v637 = vunpack.c.l.b16 %v294
    %v638 = vunpack.c.h.b16 %v294
    %v639 = vunpack.c.l.b16 %v295
    %v640 = vunpack.c.h.b16 %v295
    %v641 = vunpack.c.l.b16 %v296
    %v642 = vunpack.c.h.b16 %v296
    %v643 = vunpack.c.l.b16 %v297
    %v644 = vunpack.c.h.b16 %v297
    %v645 = vunpack.c.l.b16 %v298
    %v646 = vunpack.c.h.b16 %v298
    %v647 = vunpack.c.l.b16 %v299
    %v648 = vunpack.c.h.b16 %v299
    %v649 = vunpack.c.l.b16 %v300
    %v650 = vunpack.c.h.b16 %v300
    %v651 = vunpack.c.l.b16 %v301
    %v652 = vunpack.c.h.b16 %v301
    %v653 = vunpack.c.l.b16 %v302
    %v654 = vunpack.c.h.b16 %v302
    %v655 = vunpack.c.l.b16 %v303
    %v656 = vunpack.c.h.b16 %v303
    %v657 = vunpack.c.l.b16 %v304
    %v658 = vunpack.c.h.b16 %v304
    %v659 = vunpack.c.l.b16 %v305
    %v660 = vunpack.c.h.b16 %v305
    %v661 = vunpack.c.l.b16 %v306
    %v662 = vunpack.c.h.b16 %v306
    %v663 = vunpack.c.l.b16 %v307
    %v664 = vunpack.c.h.b16 %v307
    %v665 = vunpack.c.l.b16 %v308
    %v666 = vunpack.c.h.b16 %v308
    %v667 = vunpack.c.l.b16 %v309
    %v668 = vunpack.c.h.b16 %v309
    %v669 = vunpack.c.l.b16 %v310
    %v670 = vunpack.c.h.b16 %v310
    %v671 = vunpack.c.l.b16 %v311
    %v672 = vunpack.c.h.b16 %v311
    %v673 = vunpack.c.l.b16 %v312
    %v674 = vunpack.c.h.b16 %v312
    %v675 = vunpack.c.l.b16 %v313
    %v676 = vunpack.c.h.b16 %v313
    %v677 = vunpack.c.l.b16 %v314
    %v678 = vunpack.c.h.b16 %v314
    %v679 = vunpack.c.l.b16 %v315
    %v680 = vunpack.c.h.b16 %v315
    %v681 = vunpack.c.l.b16 %v316
    %v682 = vunpack.c.h.b16 %v316
    %v683 = vunpack.c.l.b16 %v317
    %v684 = vunpack.c.h.b16 %v317
    %v685 = vunpack.c.l.b16 %v318
    %v686 = vunpack.c.h.b16 %v318
    %v687 = vunpack.c.l.b16 %v319
    %v688 = vunpack.c.h.b16 %v319
    %v689 = vunpack.c.l.b16 %v320
    %v690 = vunpack.c.h.b16 %v320
    %v691 = vunpack.c.l.b16 %v321
    %v692 = vunpack.c.h.b16 %v321
    %v693 = vunpack.c.l.b16 %v322
    %v694 = vunpack.c.h.b16 %v322
    %v695 = vunpack.c.l.b16 %v323
    %v696 = vunpack.c.h.b16 %v323
    %v697 = vunpack.c.l.b16 %v324
    %v698 = vunpack.c.h.b16 %v324
    %v699 = vunpack.c.l.b16 %v325
    %v700 = vunpack.c.h.b16 %v325
    %v701 = vunpack.c.l.b16 %v326
    %v702 = vunpack.c.h.b16 %v326
    %v703 = vunpack.c.l.b16 %v327
    %v704 = vunpack.c.h.b16 %v327
    %v705 = vunpack.c.l.b16 %v328
    %v706 = vunpack.c.h.b16 %v328
    %v707 = vunpack.c.l.b16 %v329
    %v708 = vunpack.c.h.b16 %v329
    %v709 = vunpack.c.l.b16 %v330
    %v710 = vunpack.c.h.b16 %v330
    %v711 = vunpack.c.l.b16 %v331
    %v712 = vunpack.c.h.b16 %v331
    %v713 = vunpack.c.l.b16 %v332
    %v714 = vunpack.c.h.b16 %v332
    %v715 = vunpack.c.l.b16 %v333
    %v716 = vunpack.c.h.b16 %v333
    %v717 = vunpack.c.l.b16 %v334
    %v718 = vunpack.c.h.b16 %v334
    %v719 = vunpack.c.l.b16 %v335
    %v720 = vunpack.c.h.b16 %v335
    %v721 = vunpack.c.l.b16 %v336
    %v722 = vunpack.c.h.b16 %v336
    %v723 = vunpack.c.l.b16 %v337
    %v724 = vunpack.c.h.b16 %v337
    %v725 = vunpack.c.l.b16 %v338
    %v726 = vunpack.c.h.b16 %v338
    %v727 = vunpack.c.l.b16 %v339
    %v728 = vunpack.c.h.b16 %v339
    %v729 = vunpack.c.l.b16 %v340
    %v730 = vunpack.c.h.b16 %v340
    %v731 = vunpack.c.l.b16 %v341
    %v732 = vunpack.c.h.b16 %v341
    %v733 = vunpack.c.l.b16 %v342
    %v734 = vunpack.c.h.b16 %v342
    %v735 = vunpack.c.l.b16 %v343
    %v736 = vunpack.c.h.b16 %v343
    %v737 = vunpack.c.l.b16 %v344
    %v738 = vunpack.c.h.b16 %v344
    %v739 = vunpack.c.l.b16 %v345
    %v740 = vunpack.c.h.b16 %v345
    %v741 = vunpack.c.l.b16 %v346
    %v742 = vunpack.c.h.b16 %v346
    %v743 = vunpack.c.l.b16 %v347
    %v744 = vunpack.c.h.b16 %v347
    %v745 = vunpack.c.l.b16 %v348
    %v746 = vunpack.c.h.b16 %v348
    %v747 = vunpack.c.l.b16 %v349
    %v748 = vunpack.c.h.b16 %v349
    %v749 = vunpack.c.l.b16 %v350
    %v750 = vunpack.c.h.b16 %v350
    %v751 = vunpack.c.l.b16 %v351
    %v752 = vunpack.c.h.b16 %v351
    %v753 = vunpack.c.l.b16 %v352
    %v754 = vunpack.c.h.b16 %v352
    %v755 = vunpack.c.l.b16 %v353
    %v756 = vunpack.c.h.b16 %v353
    %v757 = vunpack.c.l.b16 %v354
    %v758 = vunpack.c.h.b16 %v354
    %v759 = vunpack.c.l.b16 %v355
    %v760 = vunpack.c.h.b16 %v355
    %v761 = vunpack.c.l.b16 %v356
    %v762 = vunpack.c.h.b16 %v356
    %v763 = vunpack.c.l.b16 %v357
    %v764 = vunpack.c.h.b16 %v357
    %v765 = vunpack.c.l.b16 %v358
    %v766 = vunpack.c.h.b16 %v358
    %v767 = vunpack.c.l.b16 %v359
    %v768 = vunpack.c.h.b16 %v359
    %v769 = vunpack.c.l.b16 %v360
    %v770 = vunpack.c.h.b16 %v360
    %v771 = vunpack.c.l.b16 %v361
    %v772 = vunpack.c.h.b16 %v361
    %v773 = vunpack.c.l.b16 %v362
    %v774 = vunpack.c.h.b16 %v362
    %v775 = vunpack.c.l.b16 %v363
    %v776 = vunpack.c.h.b16 %v363
    %v777 = vunpack.c.l.b16 %v364
    %v778 = vunpack.c.h.b16 %v364
    %v779 = vunpack.c.l.b16 %v365
    %v780 = vunpack.c.h.b16 %v365
    %v781 = vunpack.c.l.b16 %v366
    %v782 = vunpack.c.h.b16 %v366
    %v783 = vunpack.c.l.b16 %v367
    %v784 = vunpack.c.h.b16 %v367
    %v785 = vunpack.c.l.b16 %v368
    %v786 = vunpack.c.h.b16 %v368
    %v787 = vunpack.c.l.b16 %v369
    %v788 = vunpack.c.h.b16 %v369
    %v789 = vunpack.c.l.b16 %v370
    %v790 = vunpack.c.h.b16 %v370
    %v791 = vunpack.c.l.b16 %v371
    %v792 = vunpack.c.h.b16 %v371
    %v793 = vunpack.c.l.b16 %v372
    %v794 = vunpack.c.h.b16 %v372
    %v795 = vunpack.c.l.b16 %v373
    %v796 = vunpack.c.h.b16 %v373
    %v797 = vunpack.c.l.b16 %v374
    %v798 = vunpack.c.h.b16 %v374
    %v799 = vunpack.c.l.b16 %v375
    %v800 = vunpack.c.h.b16 %v375
    %v801 = vunpack.c.l.b16 %v376
    %v802 = vunpack.c.h.b16 %v376
    %v803 = vunpack.c.l.b16 %v377
    %v804 = vunpack.c.h.b16 %v377
    %v805 = vunpack.c.l.b16 %v378
    %v806 = vunpack.c.h.b16 %v378
    %v807 = vunpack.c.l.b16 %v379
    %v808 = vunpack.c.h.b16 %v379
    %v809 = vunpack.c.l.b16 %v380
    %v810 = vunpack.c.h.b16 %v380
    %v811 = vunpack.c.l.b16 %v381
    %v812 = vunpack.c.h.b16 %v381
    %v813 = vunpack.c.l.b16 %v382
    %v814 = vunpack.c.h.b16 %v382
    %v815 = vunpack.c.l.b16 %v383
    %v816 = vunpack.c.h.b16 %v383
    %v817 = vunpack.c.l.b16 %v384
    %v818 = vunpack.c.h.b16 %v384
    %v819 = vunpack.c.l.b16 %v385
    %v820 = vunpack.c.h.b16 %v385
    %v821 = vunpack.c.l.b16 %v386
    %v822 = vunpack.c.h.b16 %v386
    %v823 = vunpack.c.l.b16 %v387
    %v824 = vunpack.c.h.b16 %v387
    %v825 = vunpack.c.l.b16 %v388
    %v826 = vunpack.c.h.b16 %v388
    %v827 = vunpack.c.l.b16 %v389
    %v828 = vunpack.c.h.b16 %v389
    %v829 = vunpack.c.l.b16 %v390
    %v830 = vunpack.c.h.b16 %v390
    %v831 = vunpack.c.l.b16 %v391
    %v832 = vunpack.c.h.b16 %v391
    %v833 = vunpack.c.l.b16 %v392
    %v834 = vunpack.c.h.b16 %v392
    %v835 = vunpack.c.l.b16 %v393
    %v836 = vunpack.c.h.b16 %v393
    %v837 = vunpack.c.l.b16 %v394
    %v838 = vunpack.c.h.b16 %v394
    %v839 = vunpack.c.l.b16 %v395
    %v840 = vunpack.c.h.b16 %v395
    %v841 = vunpack.c.l.b16 %v396
    %v842 = vunpack.c.h.b16 %v396
    %v843 = vunpack.c.l.b16 %v397
    %v844 = vunpack.c.h.b16 %v397
    %v845 = vunpack.c.l.b16 %v398
    %v846 = vunpack.c.h.b16 %v398
    %v847 = vunpack.c.l.b16 %v399
    %v848 = vunpack.c.h.b16 %v399
    %v849 = vunpack.c.l.b16 %v400
    %v850 = vunpack.c.h.b16 %v400
    %v851 = vunpack.c.l.b16 %v401
    %v852 = vunpack.c.h.b16 %v401
    %v853 = vunpack.c.l.b16 %v402
    %v854 = vunpack.c.h.b16 %v402
    %v855 = vunpack.c.l.b16 %v403
    %v856 = vunpack.c.h.b16 %v403
    %v857 = vunpack.c.l.b16 %v404
    %v858 = vunpack.c.h.b16 %v404
    %v859 = vunpack.c.l.b16 %v405
    %v860 = vunpack.c.h.b16 %v405
    %v861 = vunpack.c.l.b16 %v406
    %v862 = vunpack.c.h.b16 %v406
    %v863 = vunpack.c.l.b16 %v407
    %v864 = vunpack.c.h.b16 %v407
    %v865 = vunpack.c.l.b16 %v408
    %v866 = vunpack.c.h.b16 %v408
    %v867 = vunpack.c.l.b16 %v409
    %v868 = vunpack.c.h.b16 %v409
    %v869 = vunpack.c.l.b16 %v410
    %v870 = vunpack.c.h.b16 %v410
    %v871 = vunpack.c.l.b16 %v411
    %v872 = vunpack.c.h.b16 %v411
    %v873 = vunpack.c.l.b16 %v412
    %v874 = vunpack.c.h.b16 %v412
    %v875 = vunpack.c.l.b16 %v413
    %v876 = vunpack.c.h.b16 %v413
    %v877 = vunpack.c.l.b16 %v414
    %v878 = vunpack.c.h.b16 %v414
    %v879 = vunpack.c.l.b16 %v415
    %v880 = vunpack.c.h.b16 %v415
    %v881 = vunpack.c.l.b16 %v416
    %v882 = vunpack.c.h.b16 %v416
    %v883 = vunpack.c.l.b16 %v417
    %v884 = vunpack.c.h.b16 %v417
    %v885 = vunpack.c.l.b16 %v418
    %v886 = vunpack.c.h.b16 %v418
    %v887 = vunpack.c.l.b16 %v419
    %v888 = vunpack.c.h.b16 %v419
    %v889 = vunpack.c.l.b16 %v420
    %v890 = vunpack.c.h.b16 %v420
    %v891 = vunpack.c.l.b16 %v421
    %v892 = vunpack.c.h.b16 %v421
    %v893 = vunpack.c.l.b16 %v422
    %v894 = vunpack.c.h.b16 %v422
    %v895 = vunpack.c.l.b16 %v423
    %v896 = vunpack.c.h.b16 %v423
    %v897 = vunpack.c.l.b16 %v424
    %v898 = vunpack.c.h.b16 %v424
    %v899 = vunpack.c.l.b16 %v425
    %v900 = vunpack.c.h.b16 %v425
    %v901 = vunpack.c.l.b16 %v426
    %v902 = vunpack.c.h.b16 %v426
    %v903 = vunpack.c.l.b16 %v427
    %v904 = vunpack.c.h.b16 %v427
    %v905 = vunpack.c.l.b16 %v428
    %v906 = vunpack.c.h.b16 %v428
    %v907 = vunpack.c.l.b16 %v429
    %v908 = vunpack.c.h.b16 %v429
    %v909 = vunpack.c.l.b16 %v430
    %v910 = vunpack.c.h.b16 %v430
    %v911 = vunpack.c.l.b16 %v431
    %v912 = vunpack.c.h.b16 %v431
    %v913 = vunpack.c.l.b16 %v432
    %v914 = vunpack.c.h.b16 %v432
    %v915 = vpack.c.b16 %v621, %v615
    %v916 = vpack.c.b16 %v622, %v616
    %v917 = vpack.c.b16 %v623, %v617
    %v918 = vpack.c.b16 %v624, %v618
    %v919 = vpack.c.b16 %v625, %v619
    %v920 = vpack.c.b16 %v626, %v620
    %v921 = vpack.c.b16 %v633, %v627
    %v922 = vpack.c.b16 %v634, %v628
    %v923 = vpack.c.b16 %v635, %v629
    %v924 = vpack.c.b16 %v636, %v630
    %v925 = vpack.c.b16 %v637, %v631
    %v926 = vpack.c.b16 %v638, %v632
    %v927 = vpack.c.b16 %v645, %v639
    %v928 = vpack.c.b16 %v646, %v640
    %v929 = vpack.c.b16 %v647, %v641
    %v930 = vpack.c.b16 %v648, %v642
    %v931 = vpack.c.b16 %v649, %v643
    %v932 = vpack.c.b16 %v650, %v644
    %v933 = vpack.c.b16 %v657, %v651
    %v934 = vpack.c.b16 %v658, %v652
    %v935 = vpack.c.b16 %v659, %v653
    %v936 = vpack.c.b16 %v660, %v654
    %v937 = vpack.c.b16 %v661, %v655
    %v938 = vpack.c.b16 %v662, %v656
    %v939 = vpack.c.b16 %v669, %v663
    %v940 = vpack.c.b16 %v670, %v664
    %v941 = vpack.c.b16 %v671, %v665
    %v942 = vpack.c.b16 %v672, %v666
    %v943 = vpack.c.b16 %v673, %v667
    %v944 = vpack.c.b16 %v674, %v668
    %v945 = vpack.c.b16 %v681, %v675
    %v946 = vpack.c.b16 %v682, %v676
    %v947 = vpack.c.b16 %v683, %v677
    %v948 = vpack.c.b16 %v684, %v678
    %v949 = vpack.c.b16 %v685, %v679
    %v950 = vpack.c.b16 %v686, %v680
    %v951 = vpack.c.b16 %v693, %v687
    %v952 = vpack.c.b16 %v694, %v688
    %v953 = vpack.c.b16 %v695, %v689
    %v954 = vpack.c.b16 %v696, %v690
    %v955 = vpack.c.b16 %v697, %v691
    %v956 = vpack.c.b16 %v698, %v692
    %v957 = vpack.c.b16 %v705, %v699
    %v958 = vpack.c.b16 %v706, %v700
    %v959 = vpack.c.b16 %v707, %v701
    %v960 = vpack.c.b16 %v708, %v702
    %v961 = vpack.c.b16 %v709, %v703
    %v962 = vpack.c.b16 %v710, %v704
    %v963 = vpack.c.b16 %v717, %v711
    %v964 = vpack.c.b16 %v718, %v712
    %v965 = vpack.c.b16 %v719, %v713
    %v966 = vpack.c.b16 %v720, %v714
    %v967 = vpack.c.b16 %v721, %v715
    %v968 = vpack.c.b16 %v722, %v716
    %v969 = vpack.c.b16 %v729, %v723
    %v970 = vpack.c.b16 %v730, %v724
    %v971 = vpack.c.b16 %v731, %v725
    %v972 = vpack.c.b16 %v732, %v726
    %v973 = vpack.c.b16 %v733, %v727
    %v974 = vpack.c.b16 %v734, %v728
    %v975 = vpack.c.b16 %v741, %v735
    %v976 = vpack.c.b16 %v742, %v736
    %v977 = vpack.c.b16 %v743, %v737
    %v978 = vpack.c.b16 %v744, %v738
    %v979 = vpack.c.b16 %v745, %v739
    %v980 = vpack.c.b16 %v746, %v740
    %v981 = vpack.c.b16 %v753, %v747
    %v982 = vpack.c.b16 %v754, %v748
    %v983 = vpack.c.b16 %v755, %v749
    %v984 = vpack.c.b16 %v756, %v750
    %v985 = vpack.c.b16 %v757, %v751
    %v986 = vpack.c.b16 %v758, %v752
    %v987 = vpack.c.b16 %v765, %v759
    %v988 = vpack.c.b16 %v766, %v760
    %v989 = vpack.c.b16 %v767, %v761
    %v990 = vpack.c.b16 %v768, %v762
    %v991 = vpack.c.b16 %v769, %v763
    %v992 = vpack.c.b16 %v770, %v764
    %v993 = vpack.c.b16 %v777, %v771
    %v994 = vpack.c.b16 %v778, %v772
    %v995 = vpack.c.b16 %v779, %v773
    %v996 = vpack.c.b16 %v780, %v774
    %v997 = vpack.c.b16 %v781, %v775
    %v998 = vpack.c.b16 %v782, %v776
    %v999 = vpack.c.b16 %v789, %v783
    %v1000 = vpack.c.b16 %v790, %v784
    %v1001 = vpack.c.b16 %v791, %v785
    %v1002 = vpack.c.b16 %v792, %v786
    %v1003 = vpack.c.b16 %v793, %v787
    %v1004 = vpack.c.b16 %v794, %v788
    %v1005 = vpack.c.b16 %v801, %v795
    %v1006 = vpack.c.b16 %v802, %v796
    %v1007 = vpack.c.b16 %v803, %v797
    %v1008 = vpack.c.b16 %v804, %v798
    %v1009 = vpack.c.b16 %v805, %v799
    %v1010 = vpack.c.b16 %v806, %v800
    %v1011 = vpack.c.b16 %v813, %v807
    %v1012 = vpack.c.b16 %v814, %v808
    %v1013 = vpack.c.b16 %v815, %v809
    %v1014 = vpack.c.b16 %v816, %v810
    %v1015 = vpack.c.b16 %v817, %v811
    %v1016 = vpack.c.b16 %v818, %v812
    %v1017 = vpack.c.b16 %v825, %v819
    %v1018 = vpack.c.b16 %v826, %v820
    %v1019 = vpack.c.b16 %v827, %v821
    %v1020 = vpack.c.b16 %v828, %v822
    %v1021 = vpack.c.b16 %v829, %v823
    %v1022 = vpack.c.b16 %v830, %v824
    %v1023 = vpack.c.b16 %v837, %v831
    %v1024 = vpack.c.b16 %v838, %v832
    %v1025 = vpack.c.b16 %v839, %v833
    %v1026 = vpack.c.b16 %v840, %v834
    %v1027 = vpack.c.b16 %v841, %v835
    %v1028 = vpack.c.b16 %v842, %v836
    %v1029 = vpack.c.b16 %v849, %v843
    %v1030 = vpack.c.b16 %v850, %v844
    %v1031 = vpack.c.b16 %v851, %v845
    %v1032 = vpack.c.b16 %v852, %v846
    %v1033 = vpack.c.b16 %v853, %v847
    %v1034 = vpack.c.b16 %v854, %v848
    %v1035 = vpack.c.b16 %v861, %v855
    %v1036 = vpack.c.b16 %v862, %v856
    %v1037 = vpack.c.b16 %v863, %v857
    %v1038 = vpack.c.b16 %v864, %v858
    %v1039 = vpack.c.b16 %v865, %v859
    %v1040 = vpack.c.b16 %v866, %v860
    %v1041 = vpack.c.b16 %v873, %v867
    %v1042 = vpack.c.b16 %v874, %v868
    %v1043 = vpack.c.b16 %v875, %v869
    %v1044 = vpack.c.b16 %v876, %v870
    %v1045 = vpack.c.b16 %v877, %v871
    %v1046 = vpack.c.b16 %v878, %v872
    %v1047 = vpack.c.b16 %v885, %v879
    %v1048 = vpack.c.b16 %v886, %v880
    %v1049 = vpack.c.b16 %v887, %v881
    %v1050 = vpack.c.b16 %v888, %v882
    %v1051 = vpack.c.b16 %v889, %v883
    %v1052 = vpack.c.b16 %v890, %v884
    %v1053 = vpack.c.b16 %v897, %v891
    %v1054 = vpack.c.b16 %v898, %v892
    %v1055 = vpack.c.b16 %v899, %v893
    %v1056 = vpack.c.b16 %v900, %v894
    %v1057 = vpack.c.b16 %v901, %v895
    %v1058 = vpack.c.b16 %v902, %v896
    %v1059 = vpack.c.b16 %v909, %v903
    %v1060 = vpack.c.b16 %v910, %v904
    %v1061 = vpack.c.b16 %v911, %v905
    %v1062 = vpack.c.b16 %v912, %v906
    %v1063 = vpack.c.b16 %v913, %v907
    %v1064 = vpack.c.b16 %v914, %v908
    %vm1215 = vcmask 130048
    %v1217 = vsel %vm1215, %v282, 0
    %1219 = vmatprep.subr.bf16.mxu0 %v916
    %1220 = vmatpush1.bf16.msra.mxu0 %v915
    %1221 = vmatprep.subr.bf16.mxu0 %v922
    %1222 = vmatpush1.bf16.msra.mxu0 %v921
    %1223 = vmatprep.subr.bf16.mxu0 %v928
    %1224 = vmatpush1.bf16.msra.mxu0 %v927
    %1225 = vmatprep.subr.bf16.mxu0 %v934
    %1226 = vmatpush1.bf16.msra.mxu0 %v933
    %1227 = vmatprep.subr.bf16.mxu0 %v940
    %1228 = vmatpush1.bf16.msra.mxu0 %v939
    %1229 = vmatprep.subr.bf16.mxu0 %v946
    %1230 = vmatpush1.bf16.msra.mxu0 %v945
    %1231 = vmatprep.subr.bf16.mxu0 %v952
    %1232 = vmatpush1.bf16.msra.mxu0 %v951
    %1233 = vmatprep.subr.bf16.mxu0 %v958
    %1234 = vmatpush1.bf16.msra.mxu0 %v957
    %1235 = vmatprep.subr.bf16.mxu0 %v964
    %1236 = vmatpush1.bf16.msra.mxu0 %v963
    %1237 = vmatprep.subr.bf16.mxu0 %v970
    %1238 = vmatpush1.bf16.msra.mxu0 %v969
    %1239 = vmatprep.subr.bf16.mxu0 %v976
    %1240 = vmatpush1.bf16.msra.mxu0 %v975
    %1241 = vmatprep.subr.bf16.mxu0 %v982
    %1242 = vmatpush1.bf16.msra.mxu0 %v981
    %1243 = vmatprep.subr.bf16.mxu0 %v988
    %1244 = vmatpush1.bf16.msra.mxu0 %v987
    %1245 = vmatprep.subr.bf16.mxu0 %v994
    %1246 = vmatpush1.bf16.msra.mxu0 %v993
    %1247 = vmatprep.subr.bf16.mxu0 %v1000
    %1248 = vmatpush1.bf16.msra.mxu0 %v999
    %1249 = vmatprep.subr.bf16.mxu0 %v1006
    %1250 = vmatpush1.bf16.msra.mxu0 %v1005
    %1251 = vmatprep.mubr.bf16.mxu0 %v280
    %1252 = vmatmul.mubr.bf16.gmra.mrb[0].mxu0 %v279
    %v1253 = vpop.f32.mrb[0].mxu0
    %v1254 = vadd.f32 %v438, %v1253
    %v1255 = vpop.f32.mrb[0].mxu0
    %v1256 = vadd.f32 %v442, %v1255
    %v1257 = vpop.f32.mrb[0].mxu0
    %v1258 = vpop.f32.mrb[0].mxu0
    %1259 = vdwg.mxu0
    %1260 = vmatprep.subr.bf16.mxu0 %v1012
    %1261 = vmatpush1.bf16.msra.mxu0 %v1011
    %1262 = vmatprep.subr.bf16.mxu0 %v1018
    %1263 = vmatpush1.bf16.msra.mxu0 %v1017
    %1264 = vmatprep.subr.bf16.mxu0 %v1024
    %1265 = vmatpush1.bf16.msra.mxu0 %v1023
    %1266 = vmatprep.subr.bf16.mxu0 %v1030
    %1267 = vmatpush1.bf16.msra.mxu0 %v1029
    %1268 = vmatprep.subr.bf16.mxu0 %v1036
    %1269 = vmatpush1.bf16.msra.mxu0 %v1035
    %1270 = vmatprep.subr.bf16.mxu0 %v1042
    %1271 = vmatpush1.bf16.msra.mxu0 %v1041
    %1272 = vmatprep.subr.bf16.mxu0 %v1048
    %1273 = vmatpush1.bf16.msra.mxu0 %v1047
    %1274 = vmatprep.subr.bf16.mxu0 %v1054
    %1275 = vmatpush1.bf16.msra.mxu0 %v1053
    %1276 = vmatprep.subr.bf16.mxu0 %v1060
    %1277 = vmatpush1.bf16.msra.mxu0 %v1059
    %1278 = vmatprep.subr.bf16.mxu0 0
    %1279 = vmatpush1.bf16.msra.mxu0 0
    %1280 = vmatprep.subr.bf16.mxu0 0
    %1281 = vmatpush1.bf16.msra.mxu0 0
    %1282 = vmatprep.subr.bf16.mxu0 0
    %1283 = vmatpush1.bf16.msra.mxu0 0
    %1284 = vmatprep.subr.bf16.mxu0 0
    %1285 = vmatpush1.bf16.msra.mxu0 0
    %1286 = vmatprep.subr.bf16.mxu0 0
    %1287 = vmatpush1.bf16.msra.mxu0 0
    %1288 = vmatprep.subr.bf16.mxu0 0
    %1289 = vmatpush1.bf16.msra.mxu0 0
    %1290 = vmatprep.subr.bf16.mxu0 0
    %1291 = vmatpush1.bf16.msra.mxu0 0
    %1292 = vmatprep.mubr.bf16.mxu0 %v1217
    %1293 = vmatmul.mubr.bf16.gmra.mrb[0].mxu0 %v281
    %v1294 = vpop.f32.mrb[0].mxu0
    %v1295 = vadd.f32 %v1254, %v1294
    %v1296 = vpop.f32.mrb[0].mxu0
    %v1297 = vadd.f32 %v1256, %v1296
    %v1298 = vpop.f32.mrb[0].mxu0
    %v1299 = vpop.f32.mrb[0].mxu0
    %1300 = vdwg.mxu0
    %1301 = vmatprep.subr.bf16.mxu0 %v918
    %1302 = vmatpush1.bf16.msra.mxu0 %v917
    %1303 = vmatprep.subr.bf16.mxu0 %v924
    %1304 = vmatpush1.bf16.msra.mxu0 %v923
    %1305 = vmatprep.subr.bf16.mxu0 %v930
    %1306 = vmatpush1.bf16.msra.mxu0 %v929
    %1307 = vmatprep.subr.bf16.mxu0 %v936
    %1308 = vmatpush1.bf16.msra.mxu0 %v935
    %1309 = vmatprep.subr.bf16.mxu0 %v942
    %1310 = vmatpush1.bf16.msra.mxu0 %v941
    %1311 = vmatprep.subr.bf16.mxu0 %v948
    %1312 = vmatpush1.bf16.msra.mxu0 %v947
    %1313 = vmatprep.subr.bf16.mxu0 %v954
    %1314 = vmatpush1.bf16.msra.mxu0 %v953
    %1315 = vmatprep.subr.bf16.mxu0 %v960
    %1316 = vmatpush1.bf16.msra.mxu0 %v959
    %1317 = vmatprep.subr.bf16.mxu0 %v966
    %1318 = vmatpush1.bf16.msra.mxu0 %v965
    %1319 = vmatprep.subr.bf16.mxu0 %v972
    %1320 = vmatpush1.bf16.msra.mxu0 %v971
    %1321 = vmatprep.subr.bf16.mxu0 %v978
    %1322 = vmatpush1.bf16.msra.mxu0 %v977
    %1323 = vmatprep.subr.bf16.mxu0 %v984
    %1324 = vmatpush1.bf16.msra.mxu0 %v983
    %1325 = vmatprep.subr.bf16.mxu0 %v990
    %1326 = vmatpush1.bf16.msra.mxu0 %v989
    %1327 = vmatprep.subr.bf16.mxu0 %v996
    %1328 = vmatpush1.bf16.msra.mxu0 %v995
    %1329 = vmatprep.subr.bf16.mxu0 %v1002
    %1330 = vmatpush1.bf16.msra.mxu0 %v1001
    %1331 = vmatprep.subr.bf16.mxu0 %v1008
    %1332 = vmatpush1.bf16.msra.mxu0 %v1007
    %1333 = vmatprep.mubr.bf16.mxu0 %v280
    %1334 = vmatmul.mubr.bf16.gmra.mrb[0].mxu0 %v279
    %v1335 = vpop.f32.mrb[0].mxu0
    %v1336 = vadd.f32 %v446, %v1335
    %v1337 = vpop.f32.mrb[0].mxu0
    %v1338 = vadd.f32 %v450, %v1337
    %v1339 = vpop.f32.mrb[0].mxu0
    %v1340 = vpop.f32.mrb[0].mxu0
    %1341 = vdwg.mxu0
    %1342 = vmatprep.subr.bf16.mxu0 %v1014
    %1343 = vmatpush1.bf16.msra.mxu0 %v1013
    %1344 = vmatprep.subr.bf16.mxu0 %v1020
    %1345 = vmatpush1.bf16.msra.mxu0 %v1019
    %1346 = vmatprep.subr.bf16.mxu0 %v1026
    %1347 = vmatpush1.bf16.msra.mxu0 %v1025
    %1348 = vmatprep.subr.bf16.mxu0 %v1032
    %1349 = vmatpush1.bf16.msra.mxu0 %v1031
    %1350 = vmatprep.subr.bf16.mxu0 %v1038
    %1351 = vmatpush1.bf16.msra.mxu0 %v1037
    %1352 = vmatprep.subr.bf16.mxu0 %v1044
    %1353 = vmatpush1.bf16.msra.mxu0 %v1043
    %1354 = vmatprep.subr.bf16.mxu0 %v1050
    %1355 = vmatpush1.bf16.msra.mxu0 %v1049
    %1356 = vmatprep.subr.bf16.mxu0 %v1056
    %1357 = vmatpush1.bf16.msra.mxu0 %v1055
    %1358 = vmatprep.subr.bf16.mxu0 %v1062
    %1359 = vmatpush1.bf16.msra.mxu0 %v1061
    %1360 = vmatprep.subr.bf16.mxu0 0
    %1361 = vmatpush1.bf16.msra.mxu0 0
    %1362 = vmatprep.subr.bf16.mxu0 0
    %1363 = vmatpush1.bf16.msra.mxu0 0
    %1364 = vmatprep.subr.bf16.mxu0 0
    %1365 = vmatpush1.bf16.msra.mxu0 0
    %1366 = vmatprep.subr.bf16.mxu0 0
    %1367 = vmatpush1.bf16.msra.mxu0 0
    %1368 = vmatprep.subr.bf16.mxu0 0
    %1369 = vmatpush1.bf16.msra.mxu0 0
    %1370 = vmatprep.subr.bf16.mxu0 0
    %1371 = vmatpush1.bf16.msra.mxu0 0
    %1372 = vmatprep.subr.bf16.mxu0 0
    %1373 = vmatpush1.bf16.msra.mxu0 0
    %1374 = vmatprep.mubr.bf16.mxu0 %v1217
    %1375 = vmatmul.mubr.bf16.gmra.mrb[0].mxu0 %v281
    %v1376 = vpop.f32.mrb[0].mxu0
    %v1377 = vadd.f32 %v1336, %v1376
    %v1378 = vpop.f32.mrb[0].mxu0
    %v1379 = vadd.f32 %v1338, %v1378
    %v1380 = vpop.f32.mrb[0].mxu0
    %v1381 = vpop.f32.mrb[0].mxu0
    %1382 = vdwg.mxu0
    %1383 = vmatprep.subr.bf16.mxu0 %v920
    %1384 = vmatpush1.bf16.msra.mxu0 %v919
    %1385 = vmatprep.subr.bf16.mxu0 %v926
    %1386 = vmatpush1.bf16.msra.mxu0 %v925
    %1387 = vmatprep.subr.bf16.mxu0 %v932
    %1388 = vmatpush1.bf16.msra.mxu0 %v931
    %1389 = vmatprep.subr.bf16.mxu0 %v938
    %1390 = vmatpush1.bf16.msra.mxu0 %v937
    %1391 = vmatprep.subr.bf16.mxu0 %v944
    %1392 = vmatpush1.bf16.msra.mxu0 %v943
    %1393 = vmatprep.subr.bf16.mxu0 %v950
    %1394 = vmatpush1.bf16.msra.mxu0 %v949
    %1395 = vmatprep.subr.bf16.mxu0 %v956
    %1396 = vmatpush1.bf16.msra.mxu0 %v955
    %1397 = vmatprep.subr.bf16.mxu0 %v962
    %1398 = vmatpush1.bf16.msra.mxu0 %v961
    %1399 = vmatprep.subr.bf16.mxu0 %v968
    %1400 = vmatpush1.bf16.msra.mxu0 %v967
    %1401 = vmatprep.subr.bf16.mxu0 %v974
    %1402 = vmatpush1.bf16.msra.mxu0 %v973
    %1403 = vmatprep.subr.bf16.mxu0 %v980
    %1404 = vmatpush1.bf16.msra.mxu0 %v979
    %1405 = vmatprep.subr.bf16.mxu0 %v986
    %1406 = vmatpush1.bf16.msra.mxu0 %v985
    %1407 = vmatprep.subr.bf16.mxu0 %v992
    %1408 = vmatpush1.bf16.msra.mxu0 %v991
    %1409 = vmatprep.subr.bf16.mxu0 %v998
    %1410 = vmatpush1.bf16.msra.mxu0 %v997
    %1411 = vmatprep.subr.bf16.mxu0 %v1004
    %1412 = vmatpush1.bf16.msra.mxu0 %v1003
    %1413 = vmatprep.subr.bf16.mxu0 %v1010
    %1414 = vmatpush1.bf16.msra.mxu0 %v1009
    %1415 = vmatprep.mubr.bf16.mxu0 %v280
    %1416 = vmatmul.mubr.bf16.gmra.mrb[0].mxu0 %v279
    %v1417 = vpop.f32.mrb[0].mxu0
    %v1418 = vadd.f32 %v454, %v1417
    %v1419 = vpop.f32.mrb[0].mxu0
    %v1420 = vadd.f32 %v458, %v1419
    %v1421 = vpop.f32.mrb[0].mxu0
    %v1422 = vpop.f32.mrb[0].mxu0
    %1423 = vdwg.mxu0
    %1424 = vmatprep.subr.bf16.mxu0 %v1016
    %1425 = vmatpush1.bf16.msra.mxu0 %v1015
    %1426 = vmatprep.subr.bf16.mxu0 %v1022
    %1427 = vmatpush1.bf16.msra.mxu0 %v1021
    %1428 = vmatprep.subr.bf16.mxu0 %v1028
    %1429 = vmatpush1.bf16.msra.mxu0 %v1027
    %1430 = vmatprep.subr.bf16.mxu0 %v1034
    %1431 = vmatpush1.bf16.msra.mxu0 %v1033
    %1432 = vmatprep.subr.bf16.mxu0 %v1040
    %1433 = vmatpush1.bf16.msra.mxu0 %v1039
    %1434 = vmatprep.subr.bf16.mxu0 %v1046
    %1435 = vmatpush1.bf16.msra.mxu0 %v1045
    %1436 = vmatprep.subr.bf16.mxu0 %v1052
    %1437 = vmatpush1.bf16.msra.mxu0 %v1051
    %1438 = vmatprep.subr.bf16.mxu0 %v1058
    %1439 = vmatpush1.bf16.msra.mxu0 %v1057
    %1440 = vmatprep.subr.bf16.mxu0 %v1064
    %1441 = vmatpush1.bf16.msra.mxu0 %v1063
    %1442 = vmatprep.subr.bf16.mxu0 0
    %1443 = vmatpush1.bf16.msra.mxu0 0
    %1444 = vmatprep.subr.bf16.mxu0 0
    %1445 = vmatpush1.bf16.msra.mxu0 0
    %1446 = vmatprep.subr.bf16.mxu0 0
    %1447 = vmatpush1.bf16.msra.mxu0 0
    %1448 = vmatprep.subr.bf16.mxu0 0
    %1449 = vmatpush1.bf16.msra.mxu0 0
    %1450 = vmatprep.subr.bf16.mxu0 0
    %1451 = vmatpush1.bf16.msra.mxu0 0
    %1452 = vmatprep.subr.bf16.mxu0 0
    %1453 = vmatpush1.bf16.msra.mxu0 0
    %1454 = vmatprep.subr.bf16.mxu0 0
    %1455 = vmatpush1.bf16.msra.mxu0 0
    %1456 = vmatprep.mubr.bf16.mxu0 %v1217
    %1457 = vmatmul.mubr.bf16.gmra.mrb[0].mxu0 %v281
    %v1458 = vpop.f32.mrb[0].mxu0
    %v1459 = vadd.f32 %v1418, %v1458
    %v1460 = vpop.f32.mrb[0].mxu0
    %v1461 = vadd.f32 %v1420, %v1460
    %v1462 = vpop.f32.mrb[0].mxu0
    %v1463 = vpop.f32.mrb[0].mxu0
    %1464 = vdwg.mxu0
    %1465 = vst [vmem:[%s11] sm:$0xff] %v1295
    %1466 = vst [vmem:[%s11 + $0x8] sm:$0xff] %v1297
    %1467 = vst [vmem:[%s11 + $0x10] sm:$0xff] %v1377
    %1468 = vst [vmem:[%s11 + $0x18] sm:$0xff] %v1379
    %1469 = vst [vmem:[%s11 + $0x20] sm:$0xff] %v1459
    %1470 = vst [vmem:[%s11 + $0x28] sm:$0xff] %v1461
    %v1471 = vld [vmem:[#allocation6] sm:$0xff]
    %v1472 = vld [vmem:[#allocation6 + $0x8] sm:$0xff]
    %v1473 = vld [vmem:[#allocation6 + $0x10] sm:$0xff]
    %v1474 = vld [vmem:[#allocation6 + $0x18] sm:$0xff]
    %v1475 = vld [vmem:[%s6] sm:$0x1]
    %v1477 = vlaneseq
    %v1478 = vshrl.u32 %v1477, 7
    %v1479 = vsub.s32 0, %v1478
    %v1480 = vrot.slane %v1475, %v1479
    %v1483 = vsel %vm189, %v117, 0
    %1485 = vmatprep.subr.mxu0 0.0
    %1486 = vmatpush1.msra.mxu0 %v1471
    %1487 = vmatprep.subr.mxu0 0.0
    %1488 = vmatpush1.msra.mxu0 %v1472
    %1489 = vmatprep.subr.mxu0 0.0
    %1490 = vmatpush1.msra.mxu0 %v1473
    %1491 = vmatprep.subr.mxu0 0.0
    %1492 = vmatpush1.msra.mxu0 %v1474
    %1493 = vmatprep.subr.mxu0 0.0
    %1494 = vmatpush1.msra.mxu0 0.0
    %1495 = vmatprep.subr.mxu0 0.0
    %1496 = vmatpush1.msra.mxu0 0.0
    %1497 = vmatprep.subr.mxu0 0.0
    %1498 = vmatpush1.msra.mxu0 0.0
    %1499 = vmatprep.subr.mxu0 0.0
    %1500 = vmatpush1.msra.mxu0 0.0
    %1501 = vmatprep.subr.mxu0 0.0
    %1502 = vmatpush1.msra.mxu0 0.0
    %1503 = vmatprep.subr.mxu0 0.0
    %1504 = vmatpush1.msra.mxu0 0.0
    %1505 = vmatprep.subr.mxu0 0.0
    %1506 = vmatpush1.msra.mxu0 0.0
    %1507 = vmatprep.subr.mxu0 0.0
    %1508 = vmatpush1.msra.mxu0 0.0
    %1509 = vmatprep.subr.mxu0 0.0
    %1510 = vmatpush1.msra.mxu0 0.0
    %1511 = vmatprep.subr.mxu0 0.0
    %1512 = vmatpush1.msra.mxu0 0.0
    %1513 = vmatprep.subr.mxu0 0.0
    %1514 = vmatpush1.msra.mxu0 0.0
    %1515 = vmatprep.subr.mxu0 0.0
    %1516 = vmatpush1.msra.mxu0 0.0
    %1517 = vmatprep.subr.mxu0 0.0
    %1518 = vmatpush1.msra.mxu0 0.0
    %1519 = vmatprep.subr.mxu0 0.0
    %1520 = vmatpush1.msra.mxu0 0.0
    %1521 = vmatprep.subr.mxu0 0.0
    %1522 = vmatpush1.msra.mxu0 0.0
    %1523 = vmatprep.subr.mxu0 0.0
    %1524 = vmatpush1.msra.mxu0 0.0
    %1525 = vmatprep.subr.mxu0 0.0
    %1526 = vmatpush1.msra.mxu0 0.0
    %1527 = vmatprep.subr.mxu0 0.0
    %1528 = vmatpush1.msra.mxu0 0.0
    %1529 = vmatprep.subr.mxu0 0.0
    %1530 = vmatpush1.msra.mxu0 0.0
    %1531 = vmatprep.subr.mxu0 0.0
    %1532 = vmatpush1.msra.mxu0 0.0
    %1533 = vmatprep.subr.mxu0 0.0
    %1534 = vmatpush1.msra.mxu0 0.0
    %1535 = vmatprep.subr.mxu0 0.0
    %1536 = vmatpush1.msra.mxu0 0.0
    %1537 = vmatprep.subr.mxu0 0.0
    %1538 = vmatpush1.msra.mxu0 0.0
    %1539 = vmatprep.subr.mxu0 0.0
    %1540 = vmatpush1.msra.mxu0 0.0
    %1541 = vmatprep.subr.mxu0 0.0
    %1542 = vmatpush1.msra.mxu0 0.0
    %1543 = vmatprep.subr.mxu0 0.0
    %1544 = vmatpush1.msra.mxu0 0.0
    %1545 = vmatprep.subr.mxu0 0.0
    %1546 = vmatpush1.msra.mxu0 0.0
    %1547 = vmatprep.subr.mxu0 0.0
    %1548 = vmatpush1.msra.mxu0 0.0
    %1549 = vmatprep.mubr.f32.mxu0 0.0
    %1550 = vmatmul.mubr.f32.gmra.mrb[0].mxu0 %v1483
    %v1551 = vpop.f32.mrb[0].mxu0
    %v1552 = vadd.f32 %v1480, %v1551
    %v1553 = vpop.f32.mrb[0].mxu0
    %1554 = vdwg.mxu0
    %v1555 = vmax.f32 %v1552, 0.0
    %v1556 = vld [vmem:[#allocation7] sm:$0xff]
    %v1557 = vld [vmem:[#allocation7 + $0x8] sm:$0xff]
    %v1558 = vld [vmem:[#allocation7 + $0x10] sm:$0xff]
    %v1559 = vld [vmem:[#allocation7 + $0x18] sm:$0xff]
    %v1560 = vld [vmem:[#allocation9] sm:$0x1]
    %v1562 = vlaneseq
    %v1563 = vshrl.u32 %v1562, 7
    %v1564 = vsub.s32 0, %v1563
    %v1565 = vrot.slane %v1560, %v1564
    %v1568 = vsel %vm189, %v1555, 0
    %1570 = vmatprep.subr.mxu0 0.0
    %1571 = vmatpush1.msra.mxu0 %v1556
    %1572 = vmatprep.subr.mxu0 0.0
    %1573 = vmatpush1.msra.mxu0 %v1557
    %1574 = vmatprep.subr.mxu0 0.0
    %1575 = vmatpush1.msra.mxu0 %v1558
    %1576 = vmatprep.subr.mxu0 0.0
    %1577 = vmatpush1.msra.mxu0 %v1559
    %1578 = vmatprep.subr.mxu0 0.0
    %1579 = vmatpush1.msra.mxu0 0.0
    %1580 = vmatprep.subr.mxu0 0.0
    %1581 = vmatpush1.msra.mxu0 0.0
    %1582 = vmatprep.subr.mxu0 0.0
    %1583 = vmatpush1.msra.mxu0 0.0
    %1584 = vmatprep.subr.mxu0 0.0
    %1585 = vmatpush1.msra.mxu0 0.0
    %1586 = vmatprep.subr.mxu0 0.0
    %1587 = vmatpush1.msra.mxu0 0.0
    %1588 = vmatprep.subr.mxu0 0.0
    %1589 = vmatpush1.msra.mxu0 0.0
    %1590 = vmatprep.subr.mxu0 0.0
    %1591 = vmatpush1.msra.mxu0 0.0
    %1592 = vmatprep.subr.mxu0 0.0
    %1593 = vmatpush1.msra.mxu0 0.0
    %1594 = vmatprep.subr.mxu0 0.0
    %1595 = vmatpush1.msra.mxu0 0.0
    %1596 = vmatprep.subr.mxu0 0.0
    %1597 = vmatpush1.msra.mxu0 0.0
    %1598 = vmatprep.subr.mxu0 0.0
    %1599 = vmatpush1.msra.mxu0 0.0
    %1600 = vmatprep.subr.mxu0 0.0
    %1601 = vmatpush1.msra.mxu0 0.0
    %1602 = vmatprep.subr.mxu0 0.0
    %1603 = vmatpush1.msra.mxu0 0.0
    %1604 = vmatprep.subr.mxu0 0.0
    %1605 = vmatpush1.msra.mxu0 0.0
    %1606 = vmatprep.subr.mxu0 0.0
    %1607 = vmatpush1.msra.mxu0 0.0
    %1608 = vmatprep.subr.mxu0 0.0
    %1609 = vmatpush1.msra.mxu0 0.0
    %1610 = vmatprep.subr.mxu0 0.0
    %1611 = vmatpush1.msra.mxu0 0.0
    %1612 = vmatprep.subr.mxu0 0.0
    %1613 = vmatpush1.msra.mxu0 0.0
    %1614 = vmatprep.subr.mxu0 0.0
    %1615 = vmatpush1.msra.mxu0 0.0
    %1616 = vmatprep.subr.mxu0 0.0
    %1617 = vmatpush1.msra.mxu0 0.0
    %1618 = vmatprep.subr.mxu0 0.0
    %1619 = vmatpush1.msra.mxu0 0.0
    %1620 = vmatprep.subr.mxu0 0.0
    %1621 = vmatpush1.msra.mxu0 0.0
    %1622 = vmatprep.subr.mxu0 0.0
    %1623 = vmatpush1.msra.mxu0 0.0
    %1624 = vmatprep.subr.mxu0 0.0
    %1625 = vmatpush1.msra.mxu0 0.0
    %1626 = vmatprep.subr.mxu0 0.0
    %1627 = vmatpush1.msra.mxu0 0.0
    %1628 = vmatprep.subr.mxu0 0.0
    %1629 = vmatpush1.msra.mxu0 0.0
    %1630 = vmatprep.subr.mxu0 0.0
    %1631 = vmatpush1.msra.mxu0 0.0
    %1632 = vmatprep.subr.mxu0 0.0
    %1633 = vmatpush1.msra.mxu0 0.0
    %1634 = vmatprep.mubr.f32.mxu0 0.0
    %1635 = vmatmul.mubr.f32.gmra.mrb[0].mxu0 %v1568
    %v1636 = vpop.f32.mrb[0].mxu0
    %v1637 = vadd.f32 %v1565, %v1636
    %v1638 = vpop.f32.mrb[0].mxu0
    %1639 = vdwg.mxu0
    %v1640 = vmax.f32 %v1637, 0.0
    %v1641 = vld [vmem:[%s9] sm:$0xff]
    %v1642 = vld [vmem:[%s9 + $0x8] sm:$0xff]
    %v1643 = vld [vmem:[%s9 + $0x10] sm:$0xff]
    %v1644 = vld [vmem:[%s9 + $0x18] sm:$0xff]
    %v1645 = vld [vmem:[#allocation10] sm:$0x1]
    %v1647 = vlaneseq
    %v1648 = vshrl.u32 %v1647, 7
    %v1649 = vsub.s32 0, %v1648
    %v1650 = vrot.slane %v1645, %v1649
    %v1653 = vsel %vm189, %v1640, 0
    %1655 = vmatprep.subr.mxu0 0.0
    %1656 = vmatpush1.msra.mxu0 %v1641
    %1657 = vmatprep.subr.mxu0 0.0
    %1658 = vmatpush1.msra.mxu0 %v1642
    %1659 = vmatprep.subr.mxu0 0.0
    %1660 = vmatpush1.msra.mxu0 %v1643
    %1661 = vmatprep.subr.mxu0 0.0
    %1662 = vmatpush1.msra.mxu0 %v1644
    %1663 = vmatprep.subr.mxu0 0.0
    %1664 = vmatpush1.msra.mxu0 0.0
    %1665 = vmatprep.subr.mxu0 0.0
    %1666 = vmatpush1.msra.mxu0 0.0
    %1667 = vmatprep.subr.mxu0 0.0
    %1668 = vmatpush1.msra.mxu0 0.0
    %1669 = vmatprep.subr.mxu0 0.0
    %1670 = vmatpush1.msra.mxu0 0.0
    %1671 = vmatprep.subr.mxu0 0.0
    %1672 = vmatpush1.msra.mxu0 0.0
    %1673 = vmatprep.subr.mxu0 0.0
    %1674 = vmatpush1.msra.mxu0 0.0
    %1675 = vmatprep.subr.mxu0 0.0
    %1676 = vmatpush1.msra.mxu0 0.0
    %1677 = vmatprep.subr.mxu0 0.0
    %1678 = vmatpush1.msra.mxu0 0.0
    %1679 = vmatprep.subr.mxu0 0.0
    %1680 = vmatpush1.msra.mxu0 0.0
    %1681 = vmatprep.subr.mxu0 0.0
    %1682 = vmatpush1.msra.mxu0 0.0
    %1683 = vmatprep.subr.mxu0 0.0
    %1684 = vmatpush1.msra.mxu0 0.0
    %1685 = vmatprep.subr.mxu0 0.0
    %1686 = vmatpush1.msra.mxu0 0.0
    %1687 = vmatprep.subr.mxu0 0.0
    %1688 = vmatpush1.msra.mxu0 0.0
    %1689 = vmatprep.subr.mxu0 0.0
    %1690 = vmatpush1.msra.mxu0 0.0
    %1691 = vmatprep.subr.mxu0 0.0
    %1692 = vmatpush1.msra.mxu0 0.0
    %1693 = vmatprep.subr.mxu0 0.0
    %1694 = vmatpush1.msra.mxu0 0.0
    %1695 = vmatprep.subr.mxu0 0.0
    %1696 = vmatpush1.msra.mxu0 0.0
    %1697 = vmatprep.subr.mxu0 0.0
    %1698 = vmatpush1.msra.mxu0 0.0
    %1699 = vmatprep.subr.mxu0 0.0
    %1700 = vmatpush1.msra.mxu0 0.0
    %1701 = vmatprep.subr.mxu0 0.0
    %1702 = vmatpush1.msra.mxu0 0.0
    %1703 = vmatprep.subr.mxu0 0.0
    %1704 = vmatpush1.msra.mxu0 0.0
    %1705 = vmatprep.subr.mxu0 0.0
    %1706 = vmatpush1.msra.mxu0 0.0
    %1707 = vmatprep.subr.mxu0 0.0
    %1708 = vmatpush1.msra.mxu0 0.0
    %1709 = vmatprep.subr.mxu0 0.0
    %1710 = vmatpush1.msra.mxu0 0.0
    %1711 = vmatprep.subr.mxu0 0.0
    %1712 = vmatpush1.msra.mxu0 0.0
    %1713 = vmatprep.subr.mxu0 0.0
    %1714 = vmatpush1.msra.mxu0 0.0
    %1715 = vmatprep.subr.mxu0 0.0
    %1716 = vmatpush1.msra.mxu0 0.0
    %1717 = vmatprep.subr.mxu0 0.0
    %1718 = vmatpush1.msra.mxu0 0.0
    %1719 = vmatprep.mubr.f32.mxu0 0.0
    %1720 = vmatmul.mubr.f32.gmra.mrb[0].mxu0 %v1653
    %v1721 = vpop.f32.mrb[0].mxu0
    %v1722 = vadd.f32 %v1650, %v1721
    %v1723 = vpop.f32.mrb[0].mxu0
    %1724 = vdwg.mxu0
    %v1725 = vlaneseq
    %v1726 = vand.u32 %v1725, 127
    %v1727 = vtanh.pop %v1722
    %v1728 = vadd.f32 %v1727, 1.0
    %v1729 = vmul.f32 %v1728, 0.7
    %v1730 = vadd.f32 %v1729, 0.1
    %vm1731 = vcmp.lt.s32.totalorder %v1726, 8
    %v1732 = vsel %vm1731, %v1722, %v1730
    %1733 = vst.msk [vmem:[%s12] sm:$0xff] %vm1215, %v1732
    // Predicated region
    $region70: #{decoder_forward.1} parent=1 // pred_check
      _
    $region71: #{decoder_forward.1} parent=1 // pred_check_branch
      %1735 = sbr.rel (0) target = $region73
    $region72: #{decoder_forward.1} parent=1 // pred_region
      _
    $region73: #{decoder_forward.1} parent=1 // pred_fallthru
      _
    // Predicated region
    $region74: #{decoder_forward.1} parent=1 // pred_check
      _
    $region75: #{decoder_forward.1} parent=1 // pred_check_branch
      %1737 = sbr.rel (0) target = $region77
    $region76: #{decoder_forward.1} parent=1 // pred_region
      _
    $region77: #{decoder_forward.1} parent=1 // pred_fallthru
      _
    // Predicated region
    $region78: #{decoder_forward.1} parent=1 // pred_check
      _
    $region79: #{decoder_forward.1} parent=1 // pred_check_branch
      %1739 = sbr.rel (0) target = $region81
    $region80: #{decoder_forward.1} parent=1 // pred_region
      _
    $region81: #{decoder_forward.1} parent=1 // pred_fallthru
      _
    // Predicated region
    $region82: #{decoder_forward.1} parent=1 // pred_check
      _
    $region83: #{decoder_forward.1} parent=1 // pred_check_branch
      %1741 = sbr.rel (0) target = $region85
    $region84: #{decoder_forward.1} parent=1 // pred_region
      _
    $region85: #{decoder_forward.1} parent=1 // pred_fallthru
      _
    %1742 = vsyncpa [#allocation3], 1
    %1743 = vsyncpa [#allocation5], 1
    %1744 = vsyncpa [#allocation8], 1
    %1745 = vsyncpa [#allocation11], 1

</llo_original>
